<compile_context>
chip_gen: v6e
topology: v6e:2x2x1
jax: 0.10.0
libtpu: 0.0.40
codegen_flags: <defaults>
</compile_context>

<pallas_src>
import functools
import math

import jax
import jax.numpy as jnp
from jax import lax
from jax.experimental import pallas as pl
from jax.experimental.pallas import tpu as pltpu

EPS = 1e-6
NEG_BIG = 1e9
VMEM_LIMIT_BYTES = 48 * 1024 * 1024


# ----------------------------------------------------------------- helpers --

def _torch_layernorm(x, g, b):
    """torch-style LayerNorm: a_2*(x-mean)/(std+eps)+b_2 with unbiased std."""
    d = x.shape[-1]
    mean = jnp.mean(x, axis=-1, keepdims=True)
    var = jnp.sum((x - mean) ** 2, axis=-1, keepdims=True) / (d - 1)  # /(D-1)
    return g * (x - mean) / (jnp.sqrt(var) + EPS) + b                 # exact


# ------------------------------------------------------------------ kernel --

def _encoder_kernel(x_ref, m_ref, wqkv_ref, bqkv_ref, wo_ref, bo_ref,
                    w1_ref, b1_ref, w2_ref, b2_ref,
                    ln1_g_ref, ln1_b_ref, ln2_g_ref, ln2_b_ref,
                    fng_ref, fnb_ref,
                    o_ref, act_ref, *, n_heads):
    """One (batch, layer) grid step: attn sublayer + FFN sublayer (+ final LN)."""
    layer = pl.program_id(1)
    n_layers = pl.num_programs(1)

    # Load the input activation into the persistent VMEM carry at layer 0.
    @pl.when(layer == 0)
    def _():
        act_ref[...] = x_ref[...]

    x = act_ref[...]                                      # (S, D) f32
    s_len, d_model = x.shape
    dh = d_model // n_heads

    # ---------------- attention sublayer: x + Wo(MHA(LN(x))) ----------------
    xn = _torch_layernorm(x, ln1_g_ref[...], ln1_b_ref[...])

    # Fused QKV projection; 1/sqrt(dh) already folded into the Q columns.
    qkv = (jnp.dot(xn.astype(jnp.bfloat16), wqkv_ref[...],
                   preferred_element_type=jnp.float32)
           + bqkv_ref[...])                               # (S, 3D) f32
    qkv_b = qkv.astype(jnp.bfloat16)                      # MXU operands

    # Additive key-padding bias, computed once per step (not per head).
    bias = (m_ref[...] - 1.0) * NEG_BIG                   # (1, S): 0 or -1e9

    y = jnp.zeros((s_len, d_model), jnp.float32)          # attn @ Wo accumulator
    for h in range(n_heads):                              # static unroll (small H)
        q_h = qkv_b[:, h * dh:(h + 1) * dh]               # (S, dh) bf16
        k_h = qkv_b[:, d_model + h * dh:d_model + (h + 1) * dh]
        v_h = qkv_b[:, 2 * d_model + h * dh:2 * d_model + (h + 1) * dh]

        # q · k^T without an explicit transpose: contract last dims of both.
        s = lax.dot_general(q_h, k_h, (((1,), (1,)), ((), ())),
                            preferred_element_type=jnp.float32)   # (S, S) f32
        s = s + bias
        s = s - jnp.max(s, axis=-1, keepdims=True)        # stable softmax (f32)
        p = jnp.exp(s)
        p = p * pl.reciprocal(jnp.sum(p, axis=-1, keepdims=True), approx=True)

        pv = jnp.dot(p.astype(jnp.bfloat16), v_h,
                     preferred_element_type=jnp.float32)  # (S, dh) f32
        # Fold this head straight into the output projection (no concat).
        wo_h = wo_ref[h * dh:(h + 1) * dh, :]             # (dh, D) bf16, static
        y = y + jnp.dot(pv.astype(jnp.bfloat16), wo_h,
                        preferred_element_type=jnp.float32)

    x = x + y + bo_ref[...]                               # fused residual

    # ---------------- FFN sublayer: x + W2(relu(W1(LN(x)))) -----------------
    xn2 = _torch_layernorm(x, ln2_g_ref[...], ln2_b_ref[...])
    hdn = (jnp.dot(xn2.astype(jnp.bfloat16), w1_ref[...],
                   preferred_element_type=jnp.float32) + b1_ref[...])
    hdn = jnp.maximum(hdn, 0.0)
    y2 = (jnp.dot(hdn.astype(jnp.bfloat16), w2_ref[...],
                  preferred_element_type=jnp.float32) + b2_ref[...])
    x = x + y2

    act_ref[...] = x                                      # carry to next layer

    # ---------------- Encoder.norm on the last layer ------------------------
    @pl.when(layer == n_layers - 1)
    def _():
        o_ref[...] = _torch_layernorm(x, fng_ref[...], fnb_ref[...])


# ----------------------------------------------------------------- wrapper --

def encoder_forward(x, mask3, params):
    B, S, D = x.shape
    n_layers = params["wqkv"].shape[0]
    n_heads = params["h"]
    dff = params["w1"].shape[2]

    kern = functools.partial(_encoder_kernel, n_heads=n_heads)

    per_batch = lambda b, l: (b, 0, 0)    # activations / mask / output
    per_layer = lambda b, l: (l, 0, 0)    # stacked per-layer weights
    shared = lambda b, l: (0, 0)          # final-norm params

    return pl.pallas_call(
        kern,
        out_shape=jax.ShapeDtypeStruct((B, S, D), jnp.float32),
        grid=(B, n_layers),
        in_specs=[
            pl.BlockSpec((None, S, D), per_batch),        # x
            pl.BlockSpec((None, 1, S), per_batch),        # key-padding mask
            pl.BlockSpec((None, D, 3 * D), per_layer),    # Wqkv (bf16)
            pl.BlockSpec((None, 1, 3 * D), per_layer),    # bqkv
            pl.BlockSpec((None, D, D), per_layer),        # Wo (bf16)
            pl.BlockSpec((None, 1, D), per_layer),        # bo
            pl.BlockSpec((None, D, dff), per_layer),      # W1 (bf16)
            pl.BlockSpec((None, 1, dff), per_layer),      # b1
            pl.BlockSpec((None, dff, D), per_layer),      # W2 (bf16)
            pl.BlockSpec((None, 1, D), per_layer),        # b2
            pl.BlockSpec((None, 1, D), per_layer),        # ln1 gamma
            pl.BlockSpec((None, 1, D), per_layer),        # ln1 beta
            pl.BlockSpec((None, 1, D), per_layer),        # ln2 gamma
            pl.BlockSpec((None, 1, D), per_layer),        # ln2 beta
            pl.BlockSpec((1, D), shared),                 # Encoder.norm gamma
            pl.BlockSpec((1, D), shared),                 # Encoder.norm beta
        ],
        out_specs=pl.BlockSpec((None, S, D), per_batch),
        scratch_shapes=[pltpu.VMEM((S, D), jnp.float32)],  # resident activation
        compiler_params=pltpu.CompilerParams(
            dimension_semantics=("parallel", "arbitrary"),
            vmem_limit_bytes=VMEM_LIMIT_BYTES),
    )(x, mask3,
      params["wqkv"], params["bqkv"], params["wo"], params["bo"],
      params["w1"], params["b1"], params["w2"], params["b2"],
      params["ln1_g"], params["ln1_b"], params["ln2_g"], params["ln2_b"],
      params["norm_g"], params["norm_b"])


# ------------------------------------------------------------- init / main --

def init_params(key, d_model, d_ff, n_heads, n_layers):
    ks = jax.random.split(key, 6)
    s = 0.1
    q_scale = 1.0 / math.sqrt(d_model // n_heads)   # folded softmax scale
    wq = s * jax.random.normal(ks[0], (d_model, d_model), jnp.float32) * q_scale
    wk = s * jax.random.normal(ks[1], (d_model, d_model), jnp.float32)
    wv = s * jax.random.normal(ks[2], (d_model, d_model), jnp.float32)
    wo = s * jax.random.normal(ks[3], (d_model, d_model), jnp.float32)
    w1 = s * jax.random.normal(ks[4], (d_model, d_ff), jnp.float32)
    w2 = s * jax.random.normal(ks[5], (d_ff, d_model), jnp.float32)

    # clones() deep-copies one initialized layer N times -> identical params.
    # (The kernel also supports distinct per-layer weights via the leading N dim.)
    def rep(a):
        return jnp.stack([a] * n_layers)

    zeros_d = jnp.zeros((1, d_model), jnp.float32)
    bq = jnp.zeros((1, d_model), jnp.float32) * q_scale   # scale folded into bq too
    return {
        "h": n_heads,
        # fused QKV weight: x @ Wqkv == [x@(Wq*scale) | x@Wk | x@Wv]; bf16 operands.
        "wqkv": rep(jnp.concatenate([wq, wk, wv], axis=1).astype(jnp.bfloat16)),
        "bqkv": rep(jnp.concatenate(
            [bq, jnp.zeros((1, 2 * d_model), jnp.float32)], axis=1)),
        "wo": rep(wo.astype(jnp.bfloat16)),
        "bo": rep(zeros_d),
        "w1": rep(w1.astype(jnp.bfloat16)),
        "b1": rep(jnp.zeros((1, d_ff), jnp.float32)),
        "w2": rep(w2.astype(jnp.bfloat16)),
        "b2": rep(zeros_d),
        "ln1_g": rep(jnp.ones((1, d_model), jnp.float32)),
        "ln1_b": rep(zeros_d),
        "ln2_g": rep(jnp.ones((1, d_model), jnp.float32)),
        "ln2_b": rep(zeros_d),
        "norm_g": jnp.ones((1, d_model), jnp.float32),    # Encoder.norm
        "norm_b": zeros_d,
    }


if __name__ == "__main__":
    B, S, D, H, DFF, N = 2, 8, 32, 4, 64, 2
    key = jax.random.PRNGKey(0)
    kx, kp = jax.random.split(key)
    x = jax.random.normal(kx, (B, S, D), jnp.float32)
    # padding-style key mask, shape (B, 1, S): sequence 0 full, sequence 1 has
    # 2 padded positions.  Exact 0/1 f32; converted to an additive bias in-kernel.
    lengths = jnp.array([8, 6], jnp.int32)
    mask3 = (jnp.arange(S)[None, :] < lengths[:, None]).astype(jnp.float32)
    mask3 = mask3.reshape(B, 1, S)

    params = init_params(kp, D, DFF, H, N)
    out = encoder_forward(x, mask3, params)
    out = jax.block_until_ready(out)
    assert out.shape == (B, S, D)
    assert bool(jnp.all(jnp.isfinite(out)))
    print("KERNEL_OK")
</pallas_src>

<mosaic_0001>
module attributes {stable_mosaic.version = 11 : i64} {
  func.func @_encoder_kernel(%arg0: i32, %arg1: i32, %arg2: memref<1x8x32xf32, #tpu.memory_space<vmem>>, %arg3: memref<1x1x8xf32, #tpu.memory_space<vmem>>, %arg4: memref<1x32x96xbf16, #tpu.memory_space<vmem>>, %arg5: memref<1x1x96xf32, #tpu.memory_space<vmem>>, %arg6: memref<1x32x32xbf16, #tpu.memory_space<vmem>>, %arg7: memref<1x1x32xf32, #tpu.memory_space<vmem>>, %arg8: memref<1x32x64xbf16, #tpu.memory_space<vmem>>, %arg9: memref<1x1x64xf32, #tpu.memory_space<vmem>>, %arg10: memref<1x64x32xbf16, #tpu.memory_space<vmem>>, %arg11: memref<1x1x32xf32, #tpu.memory_space<vmem>>, %arg12: memref<1x1x32xf32, #tpu.memory_space<vmem>>, %arg13: memref<1x1x32xf32, #tpu.memory_space<vmem>>, %arg14: memref<1x1x32xf32, #tpu.memory_space<vmem>>, %arg15: memref<1x1x32xf32, #tpu.memory_space<vmem>>, %arg16: memref<1x32xf32, #tpu.memory_space<vmem>>, %arg17: memref<1x32xf32, #tpu.memory_space<vmem>>, %arg18: memref<1x8x32xf32, #tpu.memory_space<vmem>>, %arg19: memref<8x32xf32, #tpu.memory_space<vmem>>) attributes {dimension_semantics = [#tpu.dimension_semantics<parallel>, #tpu.dimension_semantics<arbitrary>], iteration_bounds = array<i64: 2, 2>, scalar_prefetch = 0 : i64, scratch_operands = 1 : i64, tpu.core_type = #tpu.core_type<tc>, window_params = [{transform_indices = @transform_0, window_bounds = array<i64: 1, 8, 32>}, {transform_indices = @transform_1, window_bounds = array<i64: 1, 1, 8>}, {transform_indices = @transform_2, window_bounds = array<i64: 1, 32, 96>}, {transform_indices = @transform_3, window_bounds = array<i64: 1, 1, 96>}, {transform_indices = @transform_4, window_bounds = array<i64: 1, 32, 32>}, {transform_indices = @transform_5, window_bounds = array<i64: 1, 1, 32>}, {transform_indices = @transform_6, window_bounds = array<i64: 1, 32, 64>}, {transform_indices = @transform_7, window_bounds = array<i64: 1, 1, 64>}, {transform_indices = @transform_8, window_bounds = array<i64: 1, 64, 32>}, {transform_indices = @transform_9, window_bounds = array<i64: 1, 1, 32>}, {transform_indices = @transform_10, window_bounds = array<i64: 1, 1, 32>}, {transform_indices = @transform_11, window_bounds = array<i64: 1, 1, 32>}, {transform_indices = @transform_12, window_bounds = array<i64: 1, 1, 32>}, {transform_indices = @transform_13, window_bounds = array<i64: 1, 1, 32>}, {pipeline_mode = #tpu.pipeline_mode<synchronous>, transform_indices = @transform_14, window_bounds = array<i64: 1, 32>}, {pipeline_mode = #tpu.pipeline_mode<synchronous>, transform_indices = @transform_15, window_bounds = array<i64: 1, 32>}, {transform_indices = @transform_16, window_bounds = array<i64: 1, 8, 32>}]} {
    %c0_i32 = arith.constant 0 : i32
    %0 = arith.cmpi eq, %arg1, %c0_i32 : i32
    %1 = arith.extui %0 : i1 to i32
    %c0_i32_0 = arith.constant 0 : i32
    %2 = arith.cmpi ne, %1, %c0_i32_0 : i32
    scf.if %2 {
      %c0_86 = arith.constant 0 : index
      %c0_87 = arith.constant 0 : index
      %c0_88 = arith.constant 0 : index
      %192 = vector.load %arg2[%c0_86, %c0_87, %c0_88] : memref<1x8x32xf32, #tpu.memory_space<vmem>>, vector<1x8x32xf32>
      %193 = vector.shape_cast %192 : vector<1x8x32xf32> to vector<8x32xf32>
      %c0_89 = arith.constant 0 : index
      %c0_90 = arith.constant 0 : index
      %194 = vector.load %arg19[%c0_89, %c0_90] : memref<8x32xf32, #tpu.memory_space<vmem>>, vector<8x32xf32>
      tpu.vector_store %arg19[%c0_89, %c0_90], %193 {strides = array<i32>} : memref<8x32xf32, #tpu.memory_space<vmem>>, vector<8x32xf32>,
    } else {
    }
    %c0 = arith.constant 0 : index
    %c0_1 = arith.constant 0 : index
    %3 = vector.load %arg19[%c0, %c0_1] : memref<8x32xf32, #tpu.memory_space<vmem>>, vector<8x32xf32>
    %c0_2 = arith.constant 0 : index
    %c0_3 = arith.constant 0 : index
    %c0_4 = arith.constant 0 : index
    %4 = vector.load %arg12[%c0_2, %c0_3, %c0_4] : memref<1x1x32xf32, #tpu.memory_space<vmem>>, vector<1x1x32xf32>
    %5 = vector.shape_cast %4 : vector<1x1x32xf32> to vector<1x32xf32>
    %c0_5 = arith.constant 0 : index
    %c0_6 = arith.constant 0 : index
    %c0_7 = arith.constant 0 : index
    %6 = vector.load %arg13[%c0_5, %c0_6, %c0_7] : memref<1x1x32xf32, #tpu.memory_space<vmem>>, vector<1x1x32xf32>
    %7 = vector.shape_cast %6 : vector<1x1x32xf32> to vector<1x32xf32>
    %cst = arith.constant dense<0.000000e+00> : vector<8xf32>
    %8 = vector.multi_reduction <add>, %3, %cst [1] : vector<8x32xf32> to vector<8xf32>
    %9 = vector.shape_cast %8 : vector<8xf32> to vector<8x1xf32>
    %cst_8 = arith.constant 3.200000e+01 : f32
    %10 = vector.broadcast %cst_8 : f32 to vector<8x1xf32>
    %11 = arith.divf %9, %10 : vector<8x1xf32>
    %12 = vector.broadcast %11 : vector<8x1xf32> to vector<8x32xf32>
    %13 = arith.subf %3, %12 : vector<8x32xf32>
    %14 = arith.mulf %13, %13 : vector<8x32xf32>
    %cst_9 = arith.constant dense<0.000000e+00> : vector<8xf32>
    %15 = vector.multi_reduction <add>, %14, %cst_9 [1] : vector<8x32xf32> to vector<8xf32>
    %16 = vector.shape_cast %15 : vector<8xf32> to vector<8x1xf32>
    %cst_10 = arith.constant 3.100000e+01 : f32
    %17 = vector.broadcast %cst_10 : f32 to vector<8x1xf32>
    %18 = arith.divf %16, %17 : vector<8x1xf32>
    %19 = vector.broadcast %11 : vector<8x1xf32> to vector<8x32xf32>
    %20 = arith.subf %3, %19 : vector<8x32xf32>
    %21 = vector.broadcast %5 : vector<1x32xf32> to vector<8x32xf32>
    %22 = arith.mulf %21, %20 : vector<8x32xf32>
    %23 = math.sqrt %18 : vector<8x1xf32>
    %cst_11 = arith.constant 9.99999997E-7 : f32
    %24 = vector.broadcast %cst_11 : f32 to vector<8x1xf32>
    %25 = arith.addf %23, %24 : vector<8x1xf32>
    %26 = vector.broadcast %25 : vector<8x1xf32> to vector<8x32xf32>
    %27 = arith.divf %22, %26 : vector<8x32xf32>
    %28 = vector.broadcast %7 : vector<1x32xf32> to vector<8x32xf32>
    %29 = arith.addf %27, %28 : vector<8x32xf32>
    %30 = arith.truncf %29 : vector<8x32xf32> to vector<8x32xbf16>
    %c0_12 = arith.constant 0 : index
    %c0_13 = arith.constant 0 : index
    %c0_14 = arith.constant 0 : index
    %31 = vector.load %arg4[%c0_12, %c0_13, %c0_14] : memref<1x32x96xbf16, #tpu.memory_space<vmem>>, vector<1x32x96xbf16>
    %32 = vector.shape_cast %31 : vector<1x32x96xbf16> to vector<32x96xbf16>
    %cst_15 = arith.constant dense<0.000000e+00> : vector<8x96xf32>
    %33 = tpu.matmul %30, %32, %cst_15 {dimension_numbers = #tpu.dot_dimension_numbers<[1], [0], [0], [1], [0, 0, 1, 1], [], []>} : vector<8x32xbf16>, vector<32x96xbf16>, vector<8x96xf32> -> vector<8x96xf32>
    %c0_16 = arith.constant 0 : index
    %c0_17 = arith.constant 0 : index
    %c0_18 = arith.constant 0 : index
    %34 = vector.load %arg5[%c0_16, %c0_17, %c0_18] : memref<1x1x96xf32, #tpu.memory_space<vmem>>, vector<1x1x96xf32>
    %35 = vector.shape_cast %34 : vector<1x1x96xf32> to vector<1x96xf32>
    %36 = vector.broadcast %35 : vector<1x96xf32> to vector<8x96xf32>
    %37 = arith.addf %33, %36 : vector<8x96xf32>
    %38 = arith.truncf %37 : vector<8x96xf32> to vector<8x96xbf16>
    %c0_19 = arith.constant 0 : index
    %c0_20 = arith.constant 0 : index
    %c0_21 = arith.constant 0 : index
    %39 = vector.load %arg3[%c0_19, %c0_20, %c0_21] : memref<1x1x8xf32, #tpu.memory_space<vmem>>, vector<1x1x8xf32>
    %40 = vector.shape_cast %39 : vector<1x1x8xf32> to vector<1x8xf32>
    %cst_22 = arith.constant 1.000000e+00 : f32
    %41 = vector.broadcast %cst_22 : f32 to vector<1x8xf32>
    %42 = arith.subf %40, %41 : vector<1x8xf32>
    %cst_23 = arith.constant 1.000000e+09 : f32
    %43 = vector.broadcast %cst_23 : f32 to vector<1x8xf32>
    %44 = arith.mulf %42, %43 : vector<1x8xf32>
    %cst_24 = arith.constant 0.000000e+00 : f32
    %45 = vector.broadcast %cst_24 : f32 to vector<8x32xf32>
    %46 = vector.extract_strided_slice %38 {offsets = [0, 0], sizes = [8, 8], strides = [1, 1]} : vector<8x96xbf16> to vector<8x8xbf16>
    %47 = vector.extract_strided_slice %38 {offsets = [0, 32], sizes = [8, 8], strides = [1, 1]} : vector<8x96xbf16> to vector<8x8xbf16>
    %48 = vector.extract_strided_slice %38 {offsets = [0, 64], sizes = [8, 8], strides = [1, 1]} : vector<8x96xbf16> to vector<8x8xbf16>
    %cst_25 = arith.constant dense<0.000000e+00> : vector<8x8xf32>
    %49 = tpu.matmul %46, %47, %cst_25 {dimension_numbers = #tpu.dot_dimension_numbers<[1], [1], [0], [0], [0, 0, 1, 0], [], []>} : vector<8x8xbf16>, vector<8x8xbf16>, vector<8x8xf32> -> vector<8x8xf32>
    %50 = vector.broadcast %44 : vector<1x8xf32> to vector<8x8xf32>
    %51 = arith.addf %49, %50 : vector<8x8xf32>
    %cst_26 = arith.constant dense<0xFF800000> : vector<8xf32>
    %52 = vector.multi_reduction <maximumf>, %51, %cst_26 [1] : vector<8x8xf32> to vector<8xf32>
    %53 = vector.shape_cast %52 : vector<8xf32> to vector<8x1xf32>
    %54 = vector.broadcast %53 : vector<8x1xf32> to vector<8x8xf32>
    %55 = arith.subf %51, %54 : vector<8x8xf32>
    %56 = math.exp %55 : vector<8x8xf32>
    %cst_27 = arith.constant dense<0.000000e+00> : vector<8xf32>
    %57 = vector.multi_reduction <add>, %56, %cst_27 [1] : vector<8x8xf32> to vector<8xf32>
    %58 = vector.shape_cast %57 : vector<8xf32> to vector<8x1xf32>
    %59 = tpu.reciprocal %58 {approx = true} : vector<8x1xf32> -> vector<8x1xf32>
    %60 = vector.broadcast %59 : vector<8x1xf32> to vector<8x8xf32>
    %61 = arith.mulf %56, %60 : vector<8x8xf32>
    %62 = arith.truncf %61 : vector<8x8xf32> to vector<8x8xbf16>
    %cst_28 = arith.constant dense<0.000000e+00> : vector<8x8xf32>
    %63 = tpu.matmul %62, %48, %cst_28 {dimension_numbers = #tpu.dot_dimension_numbers<[1], [0], [0], [1], [0, 0, 1, 1], [], []>} : vector<8x8xbf16>, vector<8x8xbf16>, vector<8x8xf32> -> vector<8x8xf32>
    %c0_29 = arith.constant 0 : index
    %c0_30 = arith.constant 0 : index
    %c0_31 = arith.constant 0 : index
    %64 = vector.load %arg6[%c0_29, %c0_30, %c0_31] : memref<1x32x32xbf16, #tpu.memory_space<vmem>>, vector<1x8x32xbf16>
    %65 = vector.shape_cast %64 : vector<1x8x32xbf16> to vector<8x32xbf16>
    %66 = arith.truncf %63 : vector<8x8xf32> to vector<8x8xbf16>
    %cst_32 = arith.constant dense<0.000000e+00> : vector<8x32xf32>
    %67 = tpu.matmul %66, %65, %cst_32 {dimension_numbers = #tpu.dot_dimension_numbers<[1], [0], [0], [1], [0, 0, 1, 1], [], []>} : vector<8x8xbf16>, vector<8x32xbf16>, vector<8x32xf32> -> vector<8x32xf32>
    %68 = arith.addf %45, %67 : vector<8x32xf32>
    %69 = vector.extract_strided_slice %38 {offsets = [0, 8], sizes = [8, 8], strides = [1, 1]} : vector<8x96xbf16> to vector<8x8xbf16>
    %70 = vector.extract_strided_slice %38 {offsets = [0, 40], sizes = [8, 8], strides = [1, 1]} : vector<8x96xbf16> to vector<8x8xbf16>
    %71 = vector.extract_strided_slice %38 {offsets = [0, 72], sizes = [8, 8], strides = [1, 1]} : vector<8x96xbf16> to vector<8x8xbf16>
    %cst_33 = arith.constant dense<0.000000e+00> : vector<8x8xf32>
    %72 = tpu.matmul %69, %70, %cst_33 {dimension_numbers = #tpu.dot_dimension_numbers<[1], [1], [0], [0], [0, 0, 1, 0], [], []>} : vector<8x8xbf16>, vector<8x8xbf16>, vector<8x8xf32> -> vector<8x8xf32>
    %73 = vector.broadcast %44 : vector<1x8xf32> to vector<8x8xf32>
    %74 = arith.addf %72, %73 : vector<8x8xf32>
    %cst_34 = arith.constant dense<0xFF800000> : vector<8xf32>
    %75 = vector.multi_reduction <maximumf>, %74, %cst_34 [1] : vector<8x8xf32> to vector<8xf32>
    %76 = vector.shape_cast %75 : vector<8xf32> to vector<8x1xf32>
    %77 = vector.broadcast %76 : vector<8x1xf32> to vector<8x8xf32>
    %78 = arith.subf %74, %77 : vector<8x8xf32>
    %79 = math.exp %78 : vector<8x8xf32>
    %cst_35 = arith.constant dense<0.000000e+00> : vector<8xf32>
    %80 = vector.multi_reduction <add>, %79, %cst_35 [1] : vector<8x8xf32> to vector<8xf32>
    %81 = vector.shape_cast %80 : vector<8xf32> to vector<8x1xf32>
    %82 = tpu.reciprocal %81 {approx = true} : vector<8x1xf32> -> vector<8x1xf32>
    %83 = vector.broadcast %82 : vector<8x1xf32> to vector<8x8xf32>
    %84 = arith.mulf %79, %83 : vector<8x8xf32>
    %85 = arith.truncf %84 : vector<8x8xf32> to vector<8x8xbf16>
    %cst_36 = arith.constant dense<0.000000e+00> : vector<8x8xf32>
    %86 = tpu.matmul %85, %71, %cst_36 {dimension_numbers = #tpu.dot_dimension_numbers<[1], [0], [0], [1], [0, 0, 1, 1], [], []>} : vector<8x8xbf16>, vector<8x8xbf16>, vector<8x8xf32> -> vector<8x8xf32>
    %c0_37 = arith.constant 0 : index
    %c8 = arith.constant 8 : index
    %c0_38 = arith.constant 0 : index
    %87 = vector.load %arg6[%c0_37, %c8, %c0_38] : memref<1x32x32xbf16, #tpu.memory_space<vmem>>, vector<1x8x32xbf16>
    %88 = vector.shape_cast %87 : vector<1x8x32xbf16> to vector<8x32xbf16>
    %89 = arith.truncf %86 : vector<8x8xf32> to vector<8x8xbf16>
    %cst_39 = arith.constant dense<0.000000e+00> : vector<8x32xf32>
    %90 = tpu.matmul %89, %88, %cst_39 {dimension_numbers = #tpu.dot_dimension_numbers<[1], [0], [0], [1], [0, 0, 1, 1], [], []>} : vector<8x8xbf16>, vector<8x32xbf16>, vector<8x32xf32> -> vector<8x32xf32>
    %91 = arith.addf %68, %90 : vector<8x32xf32>
    %92 = vector.extract_strided_slice %38 {offsets = [0, 16], sizes = [8, 8], strides = [1, 1]} : vector<8x96xbf16> to vector<8x8xbf16>
    %93 = vector.extract_strided_slice %38 {offsets = [0, 48], sizes = [8, 8], strides = [1, 1]} : vector<8x96xbf16> to vector<8x8xbf16>
    %94 = vector.extract_strided_slice %38 {offsets = [0, 80], sizes = [8, 8], strides = [1, 1]} : vector<8x96xbf16> to vector<8x8xbf16>
    %cst_40 = arith.constant dense<0.000000e+00> : vector<8x8xf32>
    %95 = tpu.matmul %92, %93, %cst_40 {dimension_numbers = #tpu.dot_dimension_numbers<[1], [1], [0], [0], [0, 0, 1, 0], [], []>} : vector<8x8xbf16>, vector<8x8xbf16>, vector<8x8xf32> -> vector<8x8xf32>
    %96 = vector.broadcast %44 : vector<1x8xf32> to vector<8x8xf32>
    %97 = arith.addf %95, %96 : vector<8x8xf32>
    %cst_41 = arith.constant dense<0xFF800000> : vector<8xf32>
    %98 = vector.multi_reduction <maximumf>, %97, %cst_41 [1] : vector<8x8xf32> to vector<8xf32>
    %99 = vector.shape_cast %98 : vector<8xf32> to vector<8x1xf32>
    %100 = vector.broadcast %99 : vector<8x1xf32> to vector<8x8xf32>
    %101 = arith.subf %97, %100 : vector<8x8xf32>
    %102 = math.exp %101 : vector<8x8xf32>
    %cst_42 = arith.constant dense<0.000000e+00> : vector<8xf32>
    %103 = vector.multi_reduction <add>, %102, %cst_42 [1] : vector<8x8xf32> to vector<8xf32>
    %104 = vector.shape_cast %103 : vector<8xf32> to vector<8x1xf32>
    %105 = tpu.reciprocal %104 {approx = true} : vector<8x1xf32> -> vector<8x1xf32>
    %106 = vector.broadcast %105 : vector<8x1xf32> to vector<8x8xf32>
    %107 = arith.mulf %102, %106 : vector<8x8xf32>
    %108 = arith.truncf %107 : vector<8x8xf32> to vector<8x8xbf16>
    %cst_43 = arith.constant dense<0.000000e+00> : vector<8x8xf32>
    %109 = tpu.matmul %108, %94, %cst_43 {dimension_numbers = #tpu.dot_dimension_numbers<[1], [0], [0], [1], [0, 0, 1, 1], [], []>} : vector<8x8xbf16>, vector<8x8xbf16>, vector<8x8xf32> -> vector<8x8xf32>
    %c0_44 = arith.constant 0 : index
    %c16 = arith.constant 16 : index
    %c0_45 = arith.constant 0 : index
    %110 = vector.load %arg6[%c0_44, %c16, %c0_45] : memref<1x32x32xbf16, #tpu.memory_space<vmem>>, vector<1x8x32xbf16>
    %111 = vector.shape_cast %110 : vector<1x8x32xbf16> to vector<8x32xbf16>
    %112 = arith.truncf %109 : vector<8x8xf32> to vector<8x8xbf16>
    %cst_46 = arith.constant dense<0.000000e+00> : vector<8x32xf32>
    %113 = tpu.matmul %112, %111, %cst_46 {dimension_numbers = #tpu.dot_dimension_numbers<[1], [0], [0], [1], [0, 0, 1, 1], [], []>} : vector<8x8xbf16>, vector<8x32xbf16>, vector<8x32xf32> -> vector<8x32xf32>
    %114 = arith.addf %91, %113 : vector<8x32xf32>
    %115 = vector.extract_strided_slice %38 {offsets = [0, 24], sizes = [8, 8], strides = [1, 1]} : vector<8x96xbf16> to vector<8x8xbf16>
    %116 = vector.extract_strided_slice %38 {offsets = [0, 56], sizes = [8, 8], strides = [1, 1]} : vector<8x96xbf16> to vector<8x8xbf16>
    %117 = vector.extract_strided_slice %38 {offsets = [0, 88], sizes = [8, 8], strides = [1, 1]} : vector<8x96xbf16> to vector<8x8xbf16>
    %cst_47 = arith.constant dense<0.000000e+00> : vector<8x8xf32>
    %118 = tpu.matmul %115, %116, %cst_47 {dimension_numbers = #tpu.dot_dimension_numbers<[1], [1], [0], [0], [0, 0, 1, 0], [], []>} : vector<8x8xbf16>, vector<8x8xbf16>, vector<8x8xf32> -> vector<8x8xf32>
    %119 = vector.broadcast %44 : vector<1x8xf32> to vector<8x8xf32>
    %120 = arith.addf %118, %119 : vector<8x8xf32>
    %cst_48 = arith.constant dense<0xFF800000> : vector<8xf32>
    %121 = vector.multi_reduction <maximumf>, %120, %cst_48 [1] : vector<8x8xf32> to vector<8xf32>
    %122 = vector.shape_cast %121 : vector<8xf32> to vector<8x1xf32>
    %123 = vector.broadcast %122 : vector<8x1xf32> to vector<8x8xf32>
    %124 = arith.subf %120, %123 : vector<8x8xf32>
    %125 = math.exp %124 : vector<8x8xf32>
    %cst_49 = arith.constant dense<0.000000e+00> : vector<8xf32>
    %126 = vector.multi_reduction <add>, %125, %cst_49 [1] : vector<8x8xf32> to vector<8xf32>
    %127 = vector.shape_cast %126 : vector<8xf32> to vector<8x1xf32>
    %128 = tpu.reciprocal %127 {approx = true} : vector<8x1xf32> -> vector<8x1xf32>
    %129 = vector.broadcast %128 : vector<8x1xf32> to vector<8x8xf32>
    %130 = arith.mulf %125, %129 : vector<8x8xf32>
    %131 = arith.truncf %130 : vector<8x8xf32> to vector<8x8xbf16>
    %cst_50 = arith.constant dense<0.000000e+00> : vector<8x8xf32>
    %132 = tpu.matmul %131, %117, %cst_50 {dimension_numbers = #tpu.dot_dimension_numbers<[1], [0], [0], [1], [0, 0, 1, 1], [], []>} : vector<8x8xbf16>, vector<8x8xbf16>, vector<8x8xf32> -> vector<8x8xf32>
    %c0_51 = arith.constant 0 : index
    %c24 = arith.constant 24 : index
    %c0_52 = arith.constant 0 : index
    %133 = vector.load %arg6[%c0_51, %c24, %c0_52] : memref<1x32x32xbf16, #tpu.memory_space<vmem>>, vector<1x8x32xbf16>
    %134 = vector.shape_cast %133 : vector<1x8x32xbf16> to vector<8x32xbf16>
    %135 = arith.truncf %132 : vector<8x8xf32> to vector<8x8xbf16>
    %cst_53 = arith.constant dense<0.000000e+00> : vector<8x32xf32>
    %136 = tpu.matmul %135, %134, %cst_53 {dimension_numbers = #tpu.dot_dimension_numbers<[1], [0], [0], [1], [0, 0, 1, 1], [], []>} : vector<8x8xbf16>, vector<8x32xbf16>, vector<8x32xf32> -> vector<8x32xf32>
    %137 = arith.addf %114, %136 : vector<8x32xf32>
    %138 = arith.addf %3, %137 : vector<8x32xf32>
    %c0_54 = arith.constant 0 : index
    %c0_55 = arith.constant 0 : index
    %c0_56 = arith.constant 0 : index
    %139 = vector.load %arg7[%c0_54, %c0_55, %c0_56] : memref<1x1x32xf32, #tpu.memory_space<vmem>>, vector<1x1x32xf32>
    %140 = vector.shape_cast %139 : vector<1x1x32xf32> to vector<1x32xf32>
    %141 = vector.broadcast %140 : vector<1x32xf32> to vector<8x32xf32>
    %142 = arith.addf %138, %141 : vector<8x32xf32>
    %c0_57 = arith.constant 0 : index
    %c0_58 = arith.constant 0 : index
    %c0_59 = arith.constant 0 : index
    %143 = vector.load %arg14[%c0_57, %c0_58, %c0_59] : memref<1x1x32xf32, #tpu.memory_space<vmem>>, vector<1x1x32xf32>
    %144 = vector.shape_cast %143 : vector<1x1x32xf32> to vector<1x32xf32>
    %c0_60 = arith.constant 0 : index
    %c0_61 = arith.constant 0 : index
    %c0_62 = arith.constant 0 : index
    %145 = vector.load %arg15[%c0_60, %c0_61, %c0_62] : memref<1x1x32xf32, #tpu.memory_space<vmem>>, vector<1x1x32xf32>
    %146 = vector.shape_cast %145 : vector<1x1x32xf32> to vector<1x32xf32>
    %cst_63 = arith.constant dense<0.000000e+00> : vector<8xf32>
    %147 = vector.multi_reduction <add>, %142, %cst_63 [1] : vector<8x32xf32> to vector<8xf32>
    %148 = vector.shape_cast %147 : vector<8xf32> to vector<8x1xf32>
    %cst_64 = arith.constant 3.200000e+01 : f32
    %149 = vector.broadcast %cst_64 : f32 to vector<8x1xf32>
    %150 = arith.divf %148, %149 : vector<8x1xf32>
    %151 = vector.broadcast %150 : vector<8x1xf32> to vector<8x32xf32>
    %152 = arith.subf %142, %151 : vector<8x32xf32>
    %153 = arith.mulf %152, %152 : vector<8x32xf32>
    %cst_65 = arith.constant dense<0.000000e+00> : vector<8xf32>
    %154 = vector.multi_reduction <add>, %153, %cst_65 [1] : vector<8x32xf32> to vector<8xf32>
    %155 = vector.shape_cast %154 : vector<8xf32> to vector<8x1xf32>
    %cst_66 = arith.constant 3.100000e+01 : f32
    %156 = vector.broadcast %cst_66 : f32 to vector<8x1xf32>
    %157 = arith.divf %155, %156 : vector<8x1xf32>
    %158 = vector.broadcast %150 : vector<8x1xf32> to vector<8x32xf32>
    %159 = arith.subf %142, %158 : vector<8x32xf32>
    %160 = vector.broadcast %144 : vector<1x32xf32> to vector<8x32xf32>
    %161 = arith.mulf %160, %159 : vector<8x32xf32>
    %162 = math.sqrt %157 : vector<8x1xf32>
    %cst_67 = arith.constant 9.99999997E-7 : f32
    %163 = vector.broadcast %cst_67 : f32 to vector<8x1xf32>
    %164 = arith.addf %162, %163 : vector<8x1xf32>
    %165 = vector.broadcast %164 : vector<8x1xf32> to vector<8x32xf32>
    %166 = arith.divf %161, %165 : vector<8x32xf32>
    %167 = vector.broadcast %146 : vector<1x32xf32> to vector<8x32xf32>
    %168 = arith.addf %166, %167 : vector<8x32xf32>
    %169 = arith.truncf %168 : vector<8x32xf32> to vector<8x32xbf16>
    %c0_68 = arith.constant 0 : index
    %c0_69 = arith.constant 0 : index
    %c0_70 = arith.constant 0 : index
    %170 = vector.load %arg8[%c0_68, %c0_69, %c0_70] : memref<1x32x64xbf16, #tpu.memory_space<vmem>>, vector<1x32x64xbf16>
    %171 = vector.shape_cast %170 : vector<1x32x64xbf16> to vector<32x64xbf16>
    %cst_71 = arith.constant dense<0.000000e+00> : vector<8x64xf32>
    %172 = tpu.matmul %169, %171, %cst_71 {dimension_numbers = #tpu.dot_dimension_numbers<[1], [0], [0], [1], [0, 0, 1, 1], [], []>} : vector<8x32xbf16>, vector<32x64xbf16>, vector<8x64xf32> -> vector<8x64xf32>
    %c0_72 = arith.constant 0 : index
    %c0_73 = arith.constant 0 : index
    %c0_74 = arith.constant 0 : index
    %173 = vector.load %arg9[%c0_72, %c0_73, %c0_74] : memref<1x1x64xf32, #tpu.memory_space<vmem>>, vector<1x1x64xf32>
    %174 = vector.shape_cast %173 : vector<1x1x64xf32> to vector<1x64xf32>
    %175 = vector.broadcast %174 : vector<1x64xf32> to vector<8x64xf32>
    %176 = arith.addf %172, %175 : vector<8x64xf32>
    %cst_75 = arith.constant 0.000000e+00 : f32
    %177 = vector.broadcast %cst_75 : f32 to vector<8x64xf32>
    %178 = arith.maximumf %176, %177 : vector<8x64xf32>
    %179 = arith.truncf %178 : vector<8x64xf32> to vector<8x64xbf16>
    %c0_76 = arith.constant 0 : index
    %c0_77 = arith.constant 0 : index
    %c0_78 = arith.constant 0 : index
    %180 = vector.load %arg10[%c0_76, %c0_77, %c0_78] : memref<1x64x32xbf16, #tpu.memory_space<vmem>>, vector<1x64x32xbf16>
    %181 = vector.shape_cast %180 : vector<1x64x32xbf16> to vector<64x32xbf16>
    %cst_79 = arith.constant dense<0.000000e+00> : vector<8x32xf32>
    %182 = tpu.matmul %179, %181, %cst_79 {dimension_numbers = #tpu.dot_dimension_numbers<[1], [0], [0], [1], [0, 0, 1, 1], [], []>} : vector<8x64xbf16>, vector<64x32xbf16>, vector<8x32xf32> -> vector<8x32xf32>
    %c0_80 = arith.constant 0 : index
    %c0_81 = arith.constant 0 : index
    %c0_82 = arith.constant 0 : index
    %183 = vector.load %arg11[%c0_80, %c0_81, %c0_82] : memref<1x1x32xf32, #tpu.memory_space<vmem>>, vector<1x1x32xf32>
    %184 = vector.shape_cast %183 : vector<1x1x32xf32> to vector<1x32xf32>
    %185 = vector.broadcast %184 : vector<1x32xf32> to vector<8x32xf32>
    %186 = arith.addf %182, %185 : vector<8x32xf32>
    %187 = arith.addf %142, %186 : vector<8x32xf32>
    %c0_83 = arith.constant 0 : index
    %c0_84 = arith.constant 0 : index
    %188 = vector.load %arg19[%c0_83, %c0_84] : memref<8x32xf32, #tpu.memory_space<vmem>>, vector<8x32xf32>
    tpu.vector_store %arg19[%c0_83, %c0_84], %187 {strides = array<i32>} : memref<8x32xf32, #tpu.memory_space<vmem>>, vector<8x32xf32>,
    %c1_i32 = arith.constant 1 : i32
    %189 = arith.cmpi eq, %arg1, %c1_i32 : i32
    %190 = arith.extui %189 : i1 to i32
    %c0_i32_85 = arith.constant 0 : i32
    %191 = arith.cmpi ne, %190, %c0_i32_85 : i32
    scf.if %191 {
      %c0_86 = arith.constant 0 : index
      %c0_87 = arith.constant 0 : index
      %192 = vector.load %arg16[%c0_86, %c0_87] : memref<1x32xf32, #tpu.memory_space<vmem>>, vector<1x32xf32>
      %c0_88 = arith.constant 0 : index
      %c0_89 = arith.constant 0 : index
      %193 = vector.load %arg17[%c0_88, %c0_89] : memref<1x32xf32, #tpu.memory_space<vmem>>, vector<1x32xf32>
      %cst_90 = arith.constant dense<0.000000e+00> : vector<8xf32>
      %194 = vector.multi_reduction <add>, %187, %cst_90 [1] : vector<8x32xf32> to vector<8xf32>
      %195 = vector.shape_cast %194 : vector<8xf32> to vector<8x1xf32>
      %cst_91 = arith.constant 3.200000e+01 : f32
      %196 = vector.broadcast %cst_91 : f32 to vector<8x1xf32>
      %197 = arith.divf %195, %196 : vector<8x1xf32>
      %198 = vector.broadcast %197 : vector<8x1xf32> to vector<8x32xf32>
      %199 = arith.subf %187, %198 : vector<8x32xf32>
      %200 = arith.mulf %199, %199 : vector<8x32xf32>
      %cst_92 = arith.constant dense<0.000000e+00> : vector<8xf32>
      %201 = vector.multi_reduction <add>, %200, %cst_92 [1] : vector<8x32xf32> to vector<8xf32>
      %202 = vector.shape_cast %201 : vector<8xf32> to vector<8x1xf32>
      %cst_93 = arith.constant 3.100000e+01 : f32
      %203 = vector.broadcast %cst_93 : f32 to vector<8x1xf32>
      %204 = arith.divf %202, %203 : vector<8x1xf32>
      %205 = vector.broadcast %197 : vector<8x1xf32> to vector<8x32xf32>
      %206 = arith.subf %187, %205 : vector<8x32xf32>
      %207 = vector.broadcast %192 : vector<1x32xf32> to vector<8x32xf32>
      %208 = arith.mulf %207, %206 : vector<8x32xf32>
      %209 = math.sqrt %204 : vector<8x1xf32>
      %cst_94 = arith.constant 9.99999997E-7 : f32
      %210 = vector.broadcast %cst_94 : f32 to vector<8x1xf32>
      %211 = arith.addf %209, %210 : vector<8x1xf32>
      %212 = vector.broadcast %211 : vector<8x1xf32> to vector<8x32xf32>
      %213 = arith.divf %208, %212 : vector<8x32xf32>
      %214 = vector.broadcast %193 : vector<1x32xf32> to vector<8x32xf32>
      %215 = arith.addf %213, %214 : vector<8x32xf32>
      %c0_95 = arith.constant 0 : index
      %c0_96 = arith.constant 0 : index
      %c0_97 = arith.constant 0 : index
      %216 = vector.load %arg18[%c0_95, %c0_96, %c0_97] : memref<1x8x32xf32, #tpu.memory_space<vmem>>, vector<1x8x32xf32>
      %217 = vector.shape_cast %216 : vector<1x8x32xf32> to vector<8x32xf32>
      %218 = vector.shape_cast %215 : vector<8x32xf32> to vector<1x8x32xf32>
      tpu.vector_store %arg18[%c0_95, %c0_96, %c0_97], %218 {strides = array<i32>} : memref<1x8x32xf32, #tpu.memory_space<vmem>>, vector<1x8x32xf32>,
    } else {
    }
    return
  }
  func.func @transform_0(%arg0: i32, %arg1: i32) -> (i32, i32, i32) {
    %c0_i32 = arith.constant 0 : i32
    %c0_i32_0 = arith.constant 0 : i32
    %c0_i32_1 = arith.constant 0 : i32
    return %arg0, %c0_i32, %c0_i32_0 : i32, i32, i32
  }
  func.func @transform_1(%arg0: i32, %arg1: i32) -> (i32, i32, i32) {
    %c0_i32 = arith.constant 0 : i32
    %c0_i32_0 = arith.constant 0 : i32
    %c0_i32_1 = arith.constant 0 : i32
    return %arg0, %c0_i32, %c0_i32_0 : i32, i32, i32
  }
  func.func @transform_2(%arg0: i32, %arg1: i32) -> (i32, i32, i32) {
    %c0_i32 = arith.constant 0 : i32
    %c0_i32_0 = arith.constant 0 : i32
    %c0_i32_1 = arith.constant 0 : i32
    return %arg1, %c0_i32, %c0_i32_0 : i32, i32, i32
  }
  func.func @transform_3(%arg0: i32, %arg1: i32) -> (i32, i32, i32) {
    %c0_i32 = arith.constant 0 : i32
    %c0_i32_0 = arith.constant 0 : i32
    %c0_i32_1 = arith.constant 0 : i32
    return %arg1, %c0_i32, %c0_i32_0 : i32, i32, i32
  }
  func.func @transform_4(%arg0: i32, %arg1: i32) -> (i32, i32, i32) {
    %c0_i32 = arith.constant 0 : i32
    %c0_i32_0 = arith.constant 0 : i32
    %c0_i32_1 = arith.constant 0 : i32
    return %arg1, %c0_i32, %c0_i32_0 : i32, i32, i32
  }
  func.func @transform_5(%arg0: i32, %arg1: i32) -> (i32, i32, i32) {
    %c0_i32 = arith.constant 0 : i32
    %c0_i32_0 = arith.constant 0 : i32
    %c0_i32_1 = arith.constant 0 : i32
    return %arg1, %c0_i32, %c0_i32_0 : i32, i32, i32
  }
  func.func @transform_6(%arg0: i32, %arg1: i32) -> (i32, i32, i32) {
    %c0_i32 = arith.constant 0 : i32
    %c0_i32_0 = arith.constant 0 : i32
    %c0_i32_1 = arith.constant 0 : i32
    return %arg1, %c0_i32, %c0_i32_0 : i32, i32, i32
  }
  func.func @transform_7(%arg0: i32, %arg1: i32) -> (i32, i32, i32) {
    %c0_i32 = arith.constant 0 : i32
    %c0_i32_0 = arith.constant 0 : i32
    %c0_i32_1 = arith.constant 0 : i32
    return %arg1, %c0_i32, %c0_i32_0 : i32, i32, i32
  }
  func.func @transform_8(%arg0: i32, %arg1: i32) -> (i32, i32, i32) {
    %c0_i32 = arith.constant 0 : i32
    %c0_i32_0 = arith.constant 0 : i32
    %c0_i32_1 = arith.constant 0 : i32
    return %arg1, %c0_i32, %c0_i32_0 : i32, i32, i32
  }
  func.func @transform_9(%arg0: i32, %arg1: i32) -> (i32, i32, i32) {
    %c0_i32 = arith.constant 0 : i32
    %c0_i32_0 = arith.constant 0 : i32
    %c0_i32_1 = arith.constant 0 : i32
    return %arg1, %c0_i32, %c0_i32_0 : i32, i32, i32
  }
  func.func @transform_10(%arg0: i32, %arg1: i32) -> (i32, i32, i32) {
    %c0_i32 = arith.constant 0 : i32
    %c0_i32_0 = arith.constant 0 : i32
    %c0_i32_1 = arith.constant 0 : i32
    return %arg1, %c0_i32, %c0_i32_0 : i32, i32, i32
  }
  func.func @transform_11(%arg0: i32, %arg1: i32) -> (i32, i32, i32) {
    %c0_i32 = arith.constant 0 : i32
    %c0_i32_0 = arith.constant 0 : i32
    %c0_i32_1 = arith.constant 0 : i32
    return %arg1, %c0_i32, %c0_i32_0 : i32, i32, i32
  }
  func.func @transform_12(%arg0: i32, %arg1: i32) -> (i32, i32, i32) {
    %c0_i32 = arith.constant 0 : i32
    %c0_i32_0 = arith.constant 0 : i32
    %c0_i32_1 = arith.constant 0 : i32
    return %arg1, %c0_i32, %c0_i32_0 : i32, i32, i32
  }
  func.func @transform_13(%arg0: i32, %arg1: i32) -> (i32, i32, i32) {
    %c0_i32 = arith.constant 0 : i32
    %c0_i32_0 = arith.constant 0 : i32
    %c0_i32_1 = arith.constant 0 : i32
    return %arg1, %c0_i32, %c0_i32_0 : i32, i32, i32
  }
  func.func @transform_14(%arg0: i32, %arg1: i32) -> (i32, i32) {
    %c0_i32 = arith.constant 0 : i32
    %c0_i32_0 = arith.constant 0 : i32
    %c0_i32_1 = arith.constant 0 : i32
    return %c0_i32, %c0_i32_0 : i32, i32
  }
  func.func @transform_15(%arg0: i32, %arg1: i32) -> (i32, i32) {
    %c0_i32 = arith.constant 0 : i32
    %c0_i32_0 = arith.constant 0 : i32
    %c0_i32_1 = arith.constant 0 : i32
    return %c0_i32, %c0_i32_0 : i32, i32
  }
  func.func @transform_16(%arg0: i32, %arg1: i32) -> (i32, i32, i32) {
    %c0_i32 = arith.constant 0 : i32
    %c0_i32_0 = arith.constant 0 : i32
    %c0_i32_1 = arith.constant 0 : i32
    return %arg0, %c0_i32, %c0_i32_0 : i32, i32, i32
  }
}

</mosaic_0001>

<llo_original>
// kernel: tpu_custom_call.1
$region0: #{tpu_custom_call.1}
  #allocation0 [shape = 'u32[]', space=smem, size = 0x4, offset = 0x4, fixed_abs, tag = 'smem constant byte address 0x4 - core index']
  #allocation1 [shape = 'u32[144,128]{1,0:T(1,128)}', space=vmem, size = 0x12000, scoped, tag = 'internal scratch']
  #allocation2 [shape = 'f32[8,32]{1,0:T(8,128)}', space=vmem, size = 0x1000, scoped, tag = 'scratch operand']
  %s0 = inlined_call_operand.hbm [shape: f32[2,8,32], index: 0, kind: input, shape index: {}]
  %s1 = inlined_call_operand.hbm [shape: f32[2,1,8], index: 1, kind: input, shape index: {}]
  %s2 = inlined_call_operand.vmem [shape: bf16[2,32,96], index: 2, kind: input, shape index: {}]
  %s3 = inlined_call_operand.vmem [shape: f32[2,1,96], index: 3, kind: input, shape index: {}]
  %s4 = inlined_call_operand.vmem [shape: bf16[2,32,32], index: 4, kind: input, shape index: {}]
  %s5 = inlined_call_operand.vmem [shape: f32[2,1,32], index: 5, kind: input, shape index: {}]
  %s6 = inlined_call_operand.vmem [shape: bf16[2,32,64], index: 6, kind: input, shape index: {}]
  %s7 = inlined_call_operand.vmem [shape: f32[2,1,64], index: 7, kind: input, shape index: {}]
  %s8 = inlined_call_operand.vmem [shape: bf16[2,64,32], index: 8, kind: input, shape index: {}]
  %s9 = inlined_call_operand.vmem [shape: f32[2,1,32], index: 9, kind: input, shape index: {}]
  %s10 = inlined_call_operand.vmem [shape: f32[2,1,32], index: 10, kind: input, shape index: {}]
  %s11 = inlined_call_operand.vmem [shape: f32[2,1,32], index: 11, kind: input, shape index: {}]
  %s12 = inlined_call_operand.vmem [shape: f32[2,1,32], index: 12, kind: input, shape index: {}]
  %s13 = inlined_call_operand.vmem [shape: f32[2,1,32], index: 13, kind: input, shape index: {}]
  %s14 = inlined_call_operand.vmem [shape: f32[1,32], index: 14, kind: input, shape index: {}]
  %s15 = inlined_call_operand.vmem [shape: f32[1,32], index: 15, kind: input, shape index: {}]
  %s16 = inlined_call_operand.hbm [shape: f32[2,8,32], index: 16, kind: output, shape index: {}]
  %s17 = sld [smem:[#allocation0]]
  $region113: #{tpu_custom_call.1} parent=0
    _
  %s19 = ssub.s32 1, %s17
  %s20 = scalar_select 0, %s19, %s17
  $region1: #{tpu_custom_call.1} parent=0
    #allocation3 [shape = 'u8[8192]{0}', space=vmem, size = 0x2000, scoped, tag = 'input window, operand 0']
    #allocation4 [shape = 's32[2]{0}', space=sflag, size = 0x8, scoped, tag = 'scoped memory for tpu_custom_call.1']
    #allocation5 [shape = 's32[2]{0}', space=sflag, size = 0x8, scoped, tag = 'scoped memory for tpu_custom_call.1']
    #allocation6 [shape = 'u8[1024]{0}', space=vmem, size = 0x400, scoped, tag = 'input window, operand 1']
    #allocation7 [shape = 's32[2]{0}', space=sflag, size = 0x8, scoped, tag = 'scoped memory for tpu_custom_call.1']
    #allocation8 [shape = 'u8[8192]{0}', space=vmem, size = 0x2000, scoped, tag = 'output window, operand 0']
    %21 = vsyncpa [#allocation4], 0
    %s22 = scalar_lea.sflag [#allocation4], 1
    %23 = vsyncpa %s22, 0
    %24 = vsyncpa [#allocation7], 0
    %s25 = scalar_lea.sflag [#allocation7], 1
    %26 = vsyncpa %s25, 0
    %27 = vsyncpa [#allocation5], 0
    %s28 = scalar_lea.sflag [#allocation5], 1
    %29 = vsyncpa %s28, 0
    loop: start=0, step=1, limit=6
    $region2: #{tpu_custom_call.1} parent=1 // loop_pre_header
      _
    $region3: #{tpu_custom_call.1} parent=1 // loop_header
      %s31 = sphi 0, %s35
      %p32 = scmp.ge.s32.totalorder %s31, 6
      %s38 = sphi 0, %s50
      %s39 = sphi 0, %s46
      %s40 = sphi 0, %s38
      %s41 = sphi 0, %s39
      %s42 = sphi 0, %s40
      %s43 = sphi 0, %s41
      %s53 = sphi 0, %s55
      %s56 = sphi 0, %s53
      %s57 = sphi 0, %s56
      %s73 = sphi 0, %s57
      %s79 = sphi 0, %s81
      %s82 = sphi 0, %s79
      %s83 = sphi 0, %s82
      %s99 = sphi 0, %s83
      %s105 = sphi 0, %s107
      %s108 = sphi 0, %s105
      %s109 = sphi 0, %s108
      %s125 = sphi 0, %s109
      %s131 = sphi 0, %s133
      %s134 = sphi 0, %s131
      %s135 = sphi 0, %s134
      %s151 = sphi 0, %s135
      %s157 = sphi 0, %s159
      %s160 = sphi 0, %s157
      %s161 = sphi 0, %s160
      %s177 = sphi 0, %s161
      %s183 = sphi 0, %s185
      %s186 = sphi 0, %s183
      %s187 = sphi 0, %s186
      %s203 = sphi 0, %s187
      %s209 = sphi 0, %s211
      %s212 = sphi 0, %s209
      %s213 = sphi 0, %s212
      %s229 = sphi 0, %s213
      %s235 = sphi 0, %s237
      %s238 = sphi 0, %s235
      %s239 = sphi 0, %s238
      %s255 = sphi 0, %s239
      %s261 = sphi 0, %s263
      %s264 = sphi 0, %s261
      %s265 = sphi 0, %s264
      %s281 = sphi 0, %s265
      %s287 = sphi 0, %s289
      %s290 = sphi 0, %s287
      %s291 = sphi 0, %s290
      %s307 = sphi 0, %s291
      %s313 = sphi 0, %s315
      %s316 = sphi 0, %s313
      %s317 = sphi 0, %s316
      %s333 = sphi 0, %s317
      %s339 = sphi 0, %s341
      %s342 = sphi 0, %s339
      %s343 = sphi 0, %s342
      %s359 = sphi 0, %s343
      %s365 = sphi 0, %s367
      %s368 = sphi 0, %s365
      %s369 = sphi 0, %s368
      %s385 = sphi 0, %s369
      %s391 = sphi 0, %s393
      %s394 = sphi 0, %s391
      %s395 = sphi 0, %s394
      %s411 = sphi 0, %s395
      %s415 = sphi 0, %s415
      %s417 = sphi 0, %s415
      %s418 = sphi 0, %s417
      %s432 = sphi 0, %s418
      %s436 = sphi 0, %s436
      %s438 = sphi 0, %s436
      %s439 = sphi 0, %s438
      %s453 = sphi 0, %s439
      %s459 = sphi 0, %s461
      %s462 = sphi 0, %s459
      %s463 = sphi 0, %s462
      %s479 = sphi 0, %s463
    $region4: #{tpu_custom_call.1} parent=1 // loop_header_branch
      %34 = sbr.rel (%p32) target = $region8
    $region5: #{tpu_custom_call.1} parent=1 // loop_body
      %s36 = ssub.s32 %s31, 1
      %s37 = ssub.s32 %s31, 2
      %s44 = sadd.s32 1, %s39
      %p45 = scmp.ge.s32.totalorder %s44, 2
      %s46 = scalar_select %p45, 0, %s44
      %s47 = sadd.s32 1, %s38
      %s48 = scalar_select %p45, %s47, %s38
      %p49 = scmp.ge.s32.totalorder %s48, 2
      %s50 = scalar_select %p49, 0, %s48
      %s51 = ssub.s32 %s38, %s50
      %p52 = scmp.eq.s32.totalorder %s51, 0
      %s54 = sadd.s32 %s53, 1
      %s55 = scalar_select %p52, %s53, %s54
      %p58 = pneg %p52
      %p59 = scmp.eq.s32.totalorder %s31, 3
      %p60 = por %p58, %p59
      %p61 = scmp.ne.s32.totalorder %s53, %s56
      %p62 = scmp.eq.s32.totalorder %s31, 0
      %p63 = por %p61, %p62
      %p64 = scmp.ne.s32.totalorder %s53, %s56
      %p65 = scmp.eq.s32.totalorder %s36, 3
      %p66 = por %p64, %p65
      %p67 = scmp.ne.s32.totalorder %s56, %s57
      %p68 = scmp.eq.s32.totalorder %s36, 0
      %p69 = por %p67, %p68
      %p70 = scmp.ne.s32.totalorder %s56, %s57
      %p71 = scmp.eq.s32.totalorder %s37, 3
      %p72 = por %p70, %p71
      %p74 = scmp.ne.s32.totalorder %s57, %s73
      %p75 = scmp.eq.s32.totalorder %s37, 0
      %p76 = por %p74, %p75
      %s77 = ssub.s32 %s38, %s50
      %p78 = scmp.eq.s32.totalorder %s77, 0
      %s80 = sadd.s32 %s79, 1
      %s81 = scalar_select %p78, %s79, %s80
      %p84 = pneg %p78
      %p85 = scmp.eq.s32.totalorder %s31, 3
      %p86 = por %p84, %p85
      %p87 = scmp.ne.s32.totalorder %s79, %s82
      %p88 = scmp.eq.s32.totalorder %s31, 0
      %p89 = por %p87, %p88
      %p90 = scmp.ne.s32.totalorder %s79, %s82
      %p91 = scmp.eq.s32.totalorder %s36, 3
      %p92 = por %p90, %p91
      %p93 = scmp.ne.s32.totalorder %s82, %s83
      %p94 = scmp.eq.s32.totalorder %s36, 0
      %p95 = por %p93, %p94
      %p96 = scmp.ne.s32.totalorder %s82, %s83
      %p97 = scmp.eq.s32.totalorder %s37, 3
      %p98 = por %p96, %p97
      %p100 = scmp.ne.s32.totalorder %s83, %s99
      %p101 = scmp.eq.s32.totalorder %s37, 0
      %p102 = por %p100, %p101
      %s103 = ssub.s32 %s39, %s46
      %p104 = scmp.eq.s32.totalorder %s103, 0
      %s106 = sadd.s32 %s105, 1
      %s107 = scalar_select %p104, %s105, %s106
      %p110 = pneg %p104
      %p111 = scmp.eq.s32.totalorder %s31, 3
      %p112 = por %p110, %p111
      %p113 = scmp.ne.s32.totalorder %s105, %s108
      %p114 = scmp.eq.s32.totalorder %s31, 0
      %p115 = por %p113, %p114
      %p116 = scmp.ne.s32.totalorder %s105, %s108
      %p117 = scmp.eq.s32.totalorder %s36, 3
      %p118 = por %p116, %p117
      %p119 = scmp.ne.s32.totalorder %s108, %s109
      %p120 = scmp.eq.s32.totalorder %s36, 0
      %p121 = por %p119, %p120
      %p122 = scmp.ne.s32.totalorder %s108, %s109
      %p123 = scmp.eq.s32.totalorder %s37, 3
      %p124 = por %p122, %p123
      %p126 = scmp.ne.s32.totalorder %s109, %s125
      %p127 = scmp.eq.s32.totalorder %s37, 0
      %p128 = por %p126, %p127
      %s129 = ssub.s32 %s39, %s46
      %p130 = scmp.eq.s32.totalorder %s129, 0
      %s132 = sadd.s32 %s131, 1
      %s133 = scalar_select %p130, %s131, %s132
      %p136 = pneg %p130
      %p137 = scmp.eq.s32.totalorder %s31, 3
      %p138 = por %p136, %p137
      %p139 = scmp.ne.s32.totalorder %s131, %s134
      %p140 = scmp.eq.s32.totalorder %s31, 0
      %p141 = por %p139, %p140
      %p142 = scmp.ne.s32.totalorder %s131, %s134
      %p143 = scmp.eq.s32.totalorder %s36, 3
      %p144 = por %p142, %p143
      %p145 = scmp.ne.s32.totalorder %s134, %s135
      %p146 = scmp.eq.s32.totalorder %s36, 0
      %p147 = por %p145, %p146
      %p148 = scmp.ne.s32.totalorder %s134, %s135
      %p149 = scmp.eq.s32.totalorder %s37, 3
      %p150 = por %p148, %p149
      %p152 = scmp.ne.s32.totalorder %s135, %s151
      %p153 = scmp.eq.s32.totalorder %s37, 0
      %p154 = por %p152, %p153
      %s155 = ssub.s32 %s39, %s46
      %p156 = scmp.eq.s32.totalorder %s155, 0
      %s158 = sadd.s32 %s157, 1
      %s159 = scalar_select %p156, %s157, %s158
      %p162 = pneg %p156
      %p163 = scmp.eq.s32.totalorder %s31, 3
      %p164 = por %p162, %p163
      %p165 = scmp.ne.s32.totalorder %s157, %s160
      %p166 = scmp.eq.s32.totalorder %s31, 0
      %p167 = por %p165, %p166
      %p168 = scmp.ne.s32.totalorder %s157, %s160
      %p169 = scmp.eq.s32.totalorder %s36, 3
      %p170 = por %p168, %p169
      %p171 = scmp.ne.s32.totalorder %s160, %s161
      %p172 = scmp.eq.s32.totalorder %s36, 0
      %p173 = por %p171, %p172
      %p174 = scmp.ne.s32.totalorder %s160, %s161
      %p175 = scmp.eq.s32.totalorder %s37, 3
      %p176 = por %p174, %p175
      %p178 = scmp.ne.s32.totalorder %s161, %s177
      %p179 = scmp.eq.s32.totalorder %s37, 0
      %p180 = por %p178, %p179
      %s181 = ssub.s32 %s39, %s46
      %p182 = scmp.eq.s32.totalorder %s181, 0
      %s184 = sadd.s32 %s183, 1
      %s185 = scalar_select %p182, %s183, %s184
      %p188 = pneg %p182
      %p189 = scmp.eq.s32.totalorder %s31, 3
      %p190 = por %p188, %p189
      %p191 = scmp.ne.s32.totalorder %s183, %s186
      %p192 = scmp.eq.s32.totalorder %s31, 0
      %p193 = por %p191, %p192
      %p194 = scmp.ne.s32.totalorder %s183, %s186
      %p195 = scmp.eq.s32.totalorder %s36, 3
      %p196 = por %p194, %p195
      %p197 = scmp.ne.s32.totalorder %s186, %s187
      %p198 = scmp.eq.s32.totalorder %s36, 0
      %p199 = por %p197, %p198
      %p200 = scmp.ne.s32.totalorder %s186, %s187
      %p201 = scmp.eq.s32.totalorder %s37, 3
      %p202 = por %p200, %p201
      %p204 = scmp.ne.s32.totalorder %s187, %s203
      %p205 = scmp.eq.s32.totalorder %s37, 0
      %p206 = por %p204, %p205
      %s207 = ssub.s32 %s39, %s46
      %p208 = scmp.eq.s32.totalorder %s207, 0
      %s210 = sadd.s32 %s209, 1
      %s211 = scalar_select %p208, %s209, %s210
      %p214 = pneg %p208
      %p215 = scmp.eq.s32.totalorder %s31, 3
      %p216 = por %p214, %p215
      %p217 = scmp.ne.s32.totalorder %s209, %s212
      %p218 = scmp.eq.s32.totalorder %s31, 0
      %p219 = por %p217, %p218
      %p220 = scmp.ne.s32.totalorder %s209, %s212
      %p221 = scmp.eq.s32.totalorder %s36, 3
      %p222 = por %p220, %p221
      %p223 = scmp.ne.s32.totalorder %s212, %s213
      %p224 = scmp.eq.s32.totalorder %s36, 0
      %p225 = por %p223, %p224
      %p226 = scmp.ne.s32.totalorder %s212, %s213
      %p227 = scmp.eq.s32.totalorder %s37, 3
      %p228 = por %p226, %p227
      %p230 = scmp.ne.s32.totalorder %s213, %s229
      %p231 = scmp.eq.s32.totalorder %s37, 0
      %p232 = por %p230, %p231
      %s233 = ssub.s32 %s39, %s46
      %p234 = scmp.eq.s32.totalorder %s233, 0
      %s236 = sadd.s32 %s235, 1
      %s237 = scalar_select %p234, %s235, %s236
      %p240 = pneg %p234
      %p241 = scmp.eq.s32.totalorder %s31, 3
      %p242 = por %p240, %p241
      %p243 = scmp.ne.s32.totalorder %s235, %s238
      %p244 = scmp.eq.s32.totalorder %s31, 0
      %p245 = por %p243, %p244
      %p246 = scmp.ne.s32.totalorder %s235, %s238
      %p247 = scmp.eq.s32.totalorder %s36, 3
      %p248 = por %p246, %p247
      %p249 = scmp.ne.s32.totalorder %s238, %s239
      %p250 = scmp.eq.s32.totalorder %s36, 0
      %p251 = por %p249, %p250
      %p252 = scmp.ne.s32.totalorder %s238, %s239
      %p253 = scmp.eq.s32.totalorder %s37, 3
      %p254 = por %p252, %p253
      %p256 = scmp.ne.s32.totalorder %s239, %s255
      %p257 = scmp.eq.s32.totalorder %s37, 0
      %p258 = por %p256, %p257
      %s259 = ssub.s32 %s39, %s46
      %p260 = scmp.eq.s32.totalorder %s259, 0
      %s262 = sadd.s32 %s261, 1
      %s263 = scalar_select %p260, %s261, %s262
      %p266 = pneg %p260
      %p267 = scmp.eq.s32.totalorder %s31, 3
      %p268 = por %p266, %p267
      %p269 = scmp.ne.s32.totalorder %s261, %s264
      %p270 = scmp.eq.s32.totalorder %s31, 0
      %p271 = por %p269, %p270
      %p272 = scmp.ne.s32.totalorder %s261, %s264
      %p273 = scmp.eq.s32.totalorder %s36, 3
      %p274 = por %p272, %p273
      %p275 = scmp.ne.s32.totalorder %s264, %s265
      %p276 = scmp.eq.s32.totalorder %s36, 0
      %p277 = por %p275, %p276
      %p278 = scmp.ne.s32.totalorder %s264, %s265
      %p279 = scmp.eq.s32.totalorder %s37, 3
      %p280 = por %p278, %p279
      %p282 = scmp.ne.s32.totalorder %s265, %s281
      %p283 = scmp.eq.s32.totalorder %s37, 0
      %p284 = por %p282, %p283
      %s285 = ssub.s32 %s39, %s46
      %p286 = scmp.eq.s32.totalorder %s285, 0
      %s288 = sadd.s32 %s287, 1
      %s289 = scalar_select %p286, %s287, %s288
      %p292 = pneg %p286
      %p293 = scmp.eq.s32.totalorder %s31, 3
      %p294 = por %p292, %p293
      %p295 = scmp.ne.s32.totalorder %s287, %s290
      %p296 = scmp.eq.s32.totalorder %s31, 0
      %p297 = por %p295, %p296
      %p298 = scmp.ne.s32.totalorder %s287, %s290
      %p299 = scmp.eq.s32.totalorder %s36, 3
      %p300 = por %p298, %p299
      %p301 = scmp.ne.s32.totalorder %s290, %s291
      %p302 = scmp.eq.s32.totalorder %s36, 0
      %p303 = por %p301, %p302
      %p304 = scmp.ne.s32.totalorder %s290, %s291
      %p305 = scmp.eq.s32.totalorder %s37, 3
      %p306 = por %p304, %p305
      %p308 = scmp.ne.s32.totalorder %s291, %s307
      %p309 = scmp.eq.s32.totalorder %s37, 0
      %p310 = por %p308, %p309
      %s311 = ssub.s32 %s39, %s46
      %p312 = scmp.eq.s32.totalorder %s311, 0
      %s314 = sadd.s32 %s313, 1
      %s315 = scalar_select %p312, %s313, %s314
      %p318 = pneg %p312
      %p319 = scmp.eq.s32.totalorder %s31, 3
      %p320 = por %p318, %p319
      %p321 = scmp.ne.s32.totalorder %s313, %s316
      %p322 = scmp.eq.s32.totalorder %s31, 0
      %p323 = por %p321, %p322
      %p324 = scmp.ne.s32.totalorder %s313, %s316
      %p325 = scmp.eq.s32.totalorder %s36, 3
      %p326 = por %p324, %p325
      %p327 = scmp.ne.s32.totalorder %s316, %s317
      %p328 = scmp.eq.s32.totalorder %s36, 0
      %p329 = por %p327, %p328
      %p330 = scmp.ne.s32.totalorder %s316, %s317
      %p331 = scmp.eq.s32.totalorder %s37, 3
      %p332 = por %p330, %p331
      %p334 = scmp.ne.s32.totalorder %s317, %s333
      %p335 = scmp.eq.s32.totalorder %s37, 0
      %p336 = por %p334, %p335
      %s337 = ssub.s32 %s39, %s46
      %p338 = scmp.eq.s32.totalorder %s337, 0
      %s340 = sadd.s32 %s339, 1
      %s341 = scalar_select %p338, %s339, %s340
      %p344 = pneg %p338
      %p345 = scmp.eq.s32.totalorder %s31, 3
      %p346 = por %p344, %p345
      %p347 = scmp.ne.s32.totalorder %s339, %s342
      %p348 = scmp.eq.s32.totalorder %s31, 0
      %p349 = por %p347, %p348
      %p350 = scmp.ne.s32.totalorder %s339, %s342
      %p351 = scmp.eq.s32.totalorder %s36, 3
      %p352 = por %p350, %p351
      %p353 = scmp.ne.s32.totalorder %s342, %s343
      %p354 = scmp.eq.s32.totalorder %s36, 0
      %p355 = por %p353, %p354
      %p356 = scmp.ne.s32.totalorder %s342, %s343
      %p357 = scmp.eq.s32.totalorder %s37, 3
      %p358 = por %p356, %p357
      %p360 = scmp.ne.s32.totalorder %s343, %s359
      %p361 = scmp.eq.s32.totalorder %s37, 0
      %p362 = por %p360, %p361
      %s363 = ssub.s32 %s39, %s46
      %p364 = scmp.eq.s32.totalorder %s363, 0
      %s366 = sadd.s32 %s365, 1
      %s367 = scalar_select %p364, %s365, %s366
      %p370 = pneg %p364
      %p371 = scmp.eq.s32.totalorder %s31, 3
      %p372 = por %p370, %p371
      %p373 = scmp.ne.s32.totalorder %s365, %s368
      %p374 = scmp.eq.s32.totalorder %s31, 0
      %p375 = por %p373, %p374
      %p376 = scmp.ne.s32.totalorder %s365, %s368
      %p377 = scmp.eq.s32.totalorder %s36, 3
      %p378 = por %p376, %p377
      %p379 = scmp.ne.s32.totalorder %s368, %s369
      %p380 = scmp.eq.s32.totalorder %s36, 0
      %p381 = por %p379, %p380
      %p382 = scmp.ne.s32.totalorder %s368, %s369
      %p383 = scmp.eq.s32.totalorder %s37, 3
      %p384 = por %p382, %p383
      %p386 = scmp.ne.s32.totalorder %s369, %s385
      %p387 = scmp.eq.s32.totalorder %s37, 0
      %p388 = por %p386, %p387
      %s389 = ssub.s32 %s39, %s46
      %p390 = scmp.eq.s32.totalorder %s389, 0
      %s392 = sadd.s32 %s391, 1
      %s393 = scalar_select %p390, %s391, %s392
      %p396 = pneg %p390
      %p397 = scmp.eq.s32.totalorder %s31, 3
      %p398 = por %p396, %p397
      %p399 = scmp.ne.s32.totalorder %s391, %s394
      %p400 = scmp.eq.s32.totalorder %s31, 0
      %p401 = por %p399, %p400
      %p402 = scmp.ne.s32.totalorder %s391, %s394
      %p403 = scmp.eq.s32.totalorder %s36, 3
      %p404 = por %p402, %p403
      %p405 = scmp.ne.s32.totalorder %s394, %s395
      %p406 = scmp.eq.s32.totalorder %s36, 0
      %p407 = por %p405, %p406
      %p408 = scmp.ne.s32.totalorder %s394, %s395
      %p409 = scmp.eq.s32.totalorder %s37, 3
      %p410 = por %p408, %p409
      %p412 = scmp.ne.s32.totalorder %s395, %s411
      %p413 = scmp.eq.s32.totalorder %s37, 0
      %p414 = por %p412, %p413
      %s416 = sadd.s32 %s415, 1
      %p419 = scmp.eq.s32.totalorder %s31, 3
      %p420 = scmp.ne.s32.totalorder %s415, %s417
      %p421 = scmp.eq.s32.totalorder %s31, 0
      %p422 = por %p420, %p421
      %p423 = scmp.ne.s32.totalorder %s415, %s417
      %p424 = scmp.eq.s32.totalorder %s36, 3
      %p425 = por %p423, %p424
      %p426 = scmp.ne.s32.totalorder %s417, %s418
      %p427 = scmp.eq.s32.totalorder %s36, 0
      %p428 = por %p426, %p427
      %p429 = scmp.ne.s32.totalorder %s417, %s418
      %p430 = scmp.eq.s32.totalorder %s37, 3
      %p431 = por %p429, %p430
      %p433 = scmp.ne.s32.totalorder %s418, %s432
      %p434 = scmp.eq.s32.totalorder %s37, 0
      %p435 = por %p433, %p434
      %s437 = sadd.s32 %s436, 1
      %p440 = scmp.eq.s32.totalorder %s31, 3
      %p441 = scmp.ne.s32.totalorder %s436, %s438
      %p442 = scmp.eq.s32.totalorder %s31, 0
      %p443 = por %p441, %p442
      %p444 = scmp.ne.s32.totalorder %s436, %s438
      %p445 = scmp.eq.s32.totalorder %s36, 3
      %p446 = por %p444, %p445
      %p447 = scmp.ne.s32.totalorder %s438, %s439
      %p448 = scmp.eq.s32.totalorder %s36, 0
      %p449 = por %p447, %p448
      %p450 = scmp.ne.s32.totalorder %s438, %s439
      %p451 = scmp.eq.s32.totalorder %s37, 3
      %p452 = por %p450, %p451
      %p454 = scmp.ne.s32.totalorder %s439, %s453
      %p455 = scmp.eq.s32.totalorder %s37, 0
      %p456 = por %p454, %p455
      %s457 = ssub.s32 %s38, %s50
      %p458 = scmp.eq.s32.totalorder %s457, 0
      %s460 = sadd.s32 %s459, 1
      %s461 = scalar_select %p458, %s459, %s460
      %p464 = pneg %p458
      %p465 = scmp.eq.s32.totalorder %s31, 3
      %p466 = por %p464, %p465
      %p467 = scmp.ne.s32.totalorder %s459, %s462
      %p468 = scmp.eq.s32.totalorder %s31, 0
      %p469 = por %p467, %p468
      %p470 = scmp.ne.s32.totalorder %s459, %s462
      %p471 = scmp.eq.s32.totalorder %s36, 3
      %p472 = por %p470, %p471
      %p473 = scmp.ne.s32.totalorder %s462, %s463
      %p474 = scmp.eq.s32.totalorder %s36, 0
      %p475 = por %p473, %p474
      %p476 = scmp.ne.s32.totalorder %s462, %s463
      %p477 = scmp.eq.s32.totalorder %s37, 3
      %p478 = por %p476, %p477
      %p480 = scmp.ne.s32.totalorder %s463, %s479
      %p481 = scmp.eq.s32.totalorder %s37, 0
      %p482 = por %p480, %p481
      %p483 = scmp.le.s32.totalorder 1, %s31
      %p484 = scmp.lt.s32.totalorder %s31, 5
      %p485 = pnand %p483, %p484
      %p486 = pneg %p485
      // Predicated region
      $region9: #{tpu_custom_call.1} parent=5 // pred_check
        _
      $region10: #{tpu_custom_call.1} parent=5 // pred_check_branch
        %488 = sbr.rel (%p485) target = $region12
      $region11: #{tpu_custom_call.1} parent=5 // pred_region
        %s489 = ssub.s32 %s31, 1
        // Predicated region
        $region13: #{tpu_custom_call.1} parent=11 // pred_check
          %p490 = pneg %p428
        $region14: #{tpu_custom_call.1} parent=11 // pred_check_branch
          %492 = sbr.rel (%p490) target = $region16
        $region15: #{tpu_custom_call.1} parent=11 // pred_region
          _
        $region16: #{tpu_custom_call.1} parent=11 // pred_fallthru
          _
        // Predicated region
        $region17: #{tpu_custom_call.1} parent=11 // pred_check
          %p493 = pneg %p449
        $region18: #{tpu_custom_call.1} parent=11 // pred_check_branch
          %495 = sbr.rel (%p493) target = $region20
        $region19: #{tpu_custom_call.1} parent=11 // pred_region
          _
        $region20: #{tpu_custom_call.1} parent=11 // pred_fallthru
          _
      $region12: #{tpu_custom_call.1} parent=5 // pred_fallthru
        _
      %p496 = scmp.lt.s32.totalorder %s31, 4
      // Predicated region
      $region21: #{tpu_custom_call.1} parent=5 // pred_check
        %p497 = pneg %p496
      $region22: #{tpu_custom_call.1} parent=5 // pred_check_branch
        %499 = sbr.rel (%p497) target = $region24
      $region23: #{tpu_custom_call.1} parent=5 // pred_region
        // Predicated region
        $region25: #{tpu_custom_call.1} parent=23 // pred_check
          %p500 = pneg %p63
        $region26: #{tpu_custom_call.1} parent=23 // pred_check_branch
          %502 = sbr.rel (%p500) target = $region28
        $region27: #{tpu_custom_call.1} parent=23 // pred_region
          %s503 = sand.u32 %s53, 1
          %s504 = scalar_lea.sflag [#allocation4], %s503
          %s505 = sand.u32 %s53, 1
          %s506 = smul.addr %s505, 8
          %s507 = scalar_lea.vmem [#allocation3], %s506
          %s509 = ssub.s32 128, 128
          %510 = vsyncadd %s504, %s509
          %s511 = smul.addr %s38, 128
          %s512 = scalar_lea.hbm %s0, %s511
          %s514 = sshll.u32 %s507, 4
          %s515 = int_to_ptr.vmem [resolvable:$true] %s514
          %517 = dma.hbm_to_vmem [thread:$0]  %s512, 128, %s515, %s504
        $region28: #{tpu_custom_call.1} parent=23 // pred_fallthru
          _
        // Predicated region
        $region29: #{tpu_custom_call.1} parent=23 // pred_check
          %p518 = pneg %p89
        $region30: #{tpu_custom_call.1} parent=23 // pred_check_branch
          %520 = sbr.rel (%p518) target = $region32
        $region31: #{tpu_custom_call.1} parent=23 // pred_region
          %s521 = sand.u32 %s79, 1
          %s522 = scalar_lea.sflag [#allocation7], %s521
          %s523 = sand.u32 %s79, 1
          %s524 = scalar_lea.vmem [#allocation6], %s523
          %s526 = ssub.s32 16, 16
          %527 = vsyncadd %s522, %s526
          %s528 = smul.addr %s38, 16
          %s529 = scalar_lea.hbm %s1, %s528
          %s531 = sshll.u32 %s524, 4
          %s532 = int_to_ptr.vmem [resolvable:$true] %s531
          %534 = dma.hbm_to_vmem [thread:$0]  %s529, 16, %s532, %s522
        $region32: #{tpu_custom_call.1} parent=23 // pred_fallthru
          _
        // Predicated region
        $region33: #{tpu_custom_call.1} parent=23 // pred_check
          %p535 = pneg %p115
        $region34: #{tpu_custom_call.1} parent=23 // pred_check_branch
          %537 = sbr.rel (%p535) target = $region36
        $region35: #{tpu_custom_call.1} parent=23 // pred_region
          %p538 = scmp.lt.s32.totalorder %s39, 1
          %s539 = scalar_select %p538, %s39, 1
          %s540 = smul.addr %s539, 4
          %s541 = smul.addr %s540, 4
          %s542 = scalar_lea.vmem %s2, %s541
        $region36: #{tpu_custom_call.1} parent=23 // pred_fallthru
          _
        // Predicated region
        $region37: #{tpu_custom_call.1} parent=23 // pred_check
          %p543 = pneg %p141
        $region38: #{tpu_custom_call.1} parent=23 // pred_check_branch
          %545 = sbr.rel (%p543) target = $region40
        $region39: #{tpu_custom_call.1} parent=23 // pred_region
          %p546 = scmp.lt.s32.totalorder %s39, 1
          %s547 = scalar_select %p546, %s39, 1
          %s548 = scalar_lea.vmem %s3, %s547
        $region40: #{tpu_custom_call.1} parent=23 // pred_fallthru
          _
        // Predicated region
        $region41: #{tpu_custom_call.1} parent=23 // pred_check
          %p549 = pneg %p167
        $region42: #{tpu_custom_call.1} parent=23 // pred_check_branch
          %551 = sbr.rel (%p549) target = $region44
        $region43: #{tpu_custom_call.1} parent=23 // pred_region
          %p552 = scmp.lt.s32.totalorder %s39, 1
          %s553 = scalar_select %p552, %s39, 1
          %s554 = smul.addr %s553, 4
          %s555 = smul.addr %s554, 4
          %s556 = scalar_lea.vmem %s4, %s555
        $region44: #{tpu_custom_call.1} parent=23 // pred_fallthru
          _
        // Predicated region
        $region45: #{tpu_custom_call.1} parent=23 // pred_check
          %p557 = pneg %p193
        $region46: #{tpu_custom_call.1} parent=23 // pred_check_branch
          %559 = sbr.rel (%p557) target = $region48
        $region47: #{tpu_custom_call.1} parent=23 // pred_region
          %p560 = scmp.lt.s32.totalorder %s39, 1
          %s561 = scalar_select %p560, %s39, 1
          %s562 = scalar_lea.vmem %s5, %s561
        $region48: #{tpu_custom_call.1} parent=23 // pred_fallthru
          _
        // Predicated region
        $region49: #{tpu_custom_call.1} parent=23 // pred_check
          %p563 = pneg %p219
        $region50: #{tpu_custom_call.1} parent=23 // pred_check_branch
          %565 = sbr.rel (%p563) target = $region52
        $region51: #{tpu_custom_call.1} parent=23 // pred_region
          %p566 = scmp.lt.s32.totalorder %s39, 1
          %s567 = scalar_select %p566, %s39, 1
          %s568 = smul.addr %s567, 4
          %s569 = smul.addr %s568, 4
          %s570 = scalar_lea.vmem %s6, %s569
        $region52: #{tpu_custom_call.1} parent=23 // pred_fallthru
          _
        // Predicated region
        $region53: #{tpu_custom_call.1} parent=23 // pred_check
          %p571 = pneg %p245
        $region54: #{tpu_custom_call.1} parent=23 // pred_check_branch
          %573 = sbr.rel (%p571) target = $region56
        $region55: #{tpu_custom_call.1} parent=23 // pred_region
          %p574 = scmp.lt.s32.totalorder %s39, 1
          %s575 = scalar_select %p574, %s39, 1
          %s576 = scalar_lea.vmem %s7, %s575
        $region56: #{tpu_custom_call.1} parent=23 // pred_fallthru
          _
        // Predicated region
        $region57: #{tpu_custom_call.1} parent=23 // pred_check
          %p577 = pneg %p271
        $region58: #{tpu_custom_call.1} parent=23 // pred_check_branch
          %579 = sbr.rel (%p577) target = $region60
        $region59: #{tpu_custom_call.1} parent=23 // pred_region
          %p580 = scmp.lt.s32.totalorder %s39, 1
          %s581 = scalar_select %p580, %s39, 1
          %s582 = smul.addr %s581, 8
          %s583 = smul.addr %s582, 4
          %s584 = scalar_lea.vmem %s8, %s583
        $region60: #{tpu_custom_call.1} parent=23 // pred_fallthru
          _
        // Predicated region
        $region61: #{tpu_custom_call.1} parent=23 // pred_check
          %p585 = pneg %p297
        $region62: #{tpu_custom_call.1} parent=23 // pred_check_branch
          %587 = sbr.rel (%p585) target = $region64
        $region63: #{tpu_custom_call.1} parent=23 // pred_region
          %p588 = scmp.lt.s32.totalorder %s39, 1
          %s589 = scalar_select %p588, %s39, 1
          %s590 = scalar_lea.vmem %s9, %s589
        $region64: #{tpu_custom_call.1} parent=23 // pred_fallthru
          _
        // Predicated region
        $region65: #{tpu_custom_call.1} parent=23 // pred_check
          %p591 = pneg %p323
        $region66: #{tpu_custom_call.1} parent=23 // pred_check_branch
          %593 = sbr.rel (%p591) target = $region68
        $region67: #{tpu_custom_call.1} parent=23 // pred_region
          %p594 = scmp.lt.s32.totalorder %s39, 1
          %s595 = scalar_select %p594, %s39, 1
          %s596 = scalar_lea.vmem %s10, %s595
        $region68: #{tpu_custom_call.1} parent=23 // pred_fallthru
          _
        // Predicated region
        $region69: #{tpu_custom_call.1} parent=23 // pred_check
          %p597 = pneg %p349
        $region70: #{tpu_custom_call.1} parent=23 // pred_check_branch
          %599 = sbr.rel (%p597) target = $region72
        $region71: #{tpu_custom_call.1} parent=23 // pred_region
          %p600 = scmp.lt.s32.totalorder %s39, 1
          %s601 = scalar_select %p600, %s39, 1
          %s602 = scalar_lea.vmem %s11, %s601
        $region72: #{tpu_custom_call.1} parent=23 // pred_fallthru
          _
        // Predicated region
        $region73: #{tpu_custom_call.1} parent=23 // pred_check
          %p603 = pneg %p375
        $region74: #{tpu_custom_call.1} parent=23 // pred_check_branch
          %605 = sbr.rel (%p603) target = $region76
        $region75: #{tpu_custom_call.1} parent=23 // pred_region
          %p606 = scmp.lt.s32.totalorder %s39, 1
          %s607 = scalar_select %p606, %s39, 1
          %s608 = scalar_lea.vmem %s12, %s607
        $region76: #{tpu_custom_call.1} parent=23 // pred_fallthru
          _
        // Predicated region
        $region77: #{tpu_custom_call.1} parent=23 // pred_check
          %p609 = pneg %p401
        $region78: #{tpu_custom_call.1} parent=23 // pred_check_branch
          %611 = sbr.rel (%p609) target = $region80
        $region79: #{tpu_custom_call.1} parent=23 // pred_region
          %p612 = scmp.lt.s32.totalorder %s39, 1
          %s613 = scalar_select %p612, %s39, 1
          %s614 = scalar_lea.vmem %s13, %s613
        $region80: #{tpu_custom_call.1} parent=23 // pred_fallthru
          _
      $region24: #{tpu_custom_call.1} parent=5 // pred_fallthru
        _
      %p615 = scmp.le.s32.totalorder 1, %s31
      %p616 = scmp.lt.s32.totalorder %s31, 5
      %p617 = pnand %p615, %p616
      %p618 = pneg %p617
      // Predicated region
      $region81: #{tpu_custom_call.1} parent=5 // pred_check
        _
      $region82: #{tpu_custom_call.1} parent=5 // pred_check_branch
        %620 = sbr.rel (%p617) target = $region84
      $region83: #{tpu_custom_call.1} parent=5 // pred_region
        %s621 = ssub.s32 %s31, 1
        %s622 = sand.u32 %s56, 1
        %s623 = scalar_lea.sflag [#allocation4], %s622
        %s624 = sand.u32 %s56, 1
        %s625 = smul.addr %s624, 8
        %s626 = scalar_lea.vmem [#allocation3], %s625
        // Predicated region
        $region85: #{tpu_custom_call.1} parent=83 // pred_check
          %p627 = pneg %p69
        $region86: #{tpu_custom_call.1} parent=83 // pred_check_branch
          %629 = sbr.rel (%p627) target = $region88
        $region87: #{tpu_custom_call.1} parent=83 // pred_region
          %630 = dma.done %s623, 128
        $region88: #{tpu_custom_call.1} parent=83 // pred_fallthru
          _
        %s631 = sand.u32 %s82, 1
        %s632 = scalar_lea.sflag [#allocation7], %s631
        %s633 = sand.u32 %s82, 1
        %s634 = scalar_lea.vmem [#allocation6], %s633
        // Predicated region
        $region89: #{tpu_custom_call.1} parent=83 // pred_check
          %p635 = pneg %p95
        $region90: #{tpu_custom_call.1} parent=83 // pred_check_branch
          %637 = sbr.rel (%p635) target = $region92
        $region91: #{tpu_custom_call.1} parent=83 // pred_region
          %638 = dma.done %s632, 16
        $region92: #{tpu_custom_call.1} parent=83 // pred_fallthru
          _
        %s639 = sand.u32 %s56, 1
        %s640 = scalar_lea.sflag [#allocation4], %s639
        %s641 = sand.u32 %s56, 1
        %s642 = smul.addr %s641, 8
        %s643 = scalar_lea.vmem [#allocation3], %s642
        %p644 = pneg %p69
        %p645 = pneg %p66
        %s646 = sand.u32 %s82, 1
        %s647 = scalar_lea.sflag [#allocation7], %s646
        %s648 = sand.u32 %s82, 1
        %s649 = scalar_lea.vmem [#allocation6], %s648
        %p650 = pneg %p95
        %p651 = pneg %p92
        %p652 = scmp.lt.s32.totalorder %s41, 1
        %s653 = scalar_select %p652, %s41, 1
        %s654 = smul.addr %s653, 4
        %s655 = smul.addr %s654, 4
        %s656 = scalar_lea.vmem %s2, %s655
        %p657 = pneg %p121
        %p658 = pneg %p118
        %p659 = scmp.lt.s32.totalorder %s41, 1
        %s660 = scalar_select %p659, %s41, 1
        %s661 = scalar_lea.vmem %s3, %s660
        %p662 = pneg %p147
        %p663 = pneg %p144
        %p664 = scmp.lt.s32.totalorder %s41, 1
        %s665 = scalar_select %p664, %s41, 1
        %s666 = smul.addr %s665, 4
        %s667 = smul.addr %s666, 4
        %s668 = scalar_lea.vmem %s4, %s667
        %p669 = pneg %p173
        %p670 = pneg %p170
        %p671 = scmp.lt.s32.totalorder %s41, 1
        %s672 = scalar_select %p671, %s41, 1
        %s673 = scalar_lea.vmem %s5, %s672
        %p674 = pneg %p199
        %p675 = pneg %p196
        %p676 = scmp.lt.s32.totalorder %s41, 1
        %s677 = scalar_select %p676, %s41, 1
        %s678 = smul.addr %s677, 4
        %s679 = smul.addr %s678, 4
        %s680 = scalar_lea.vmem %s6, %s679
        %p681 = pneg %p225
        %p682 = pneg %p222
        %p683 = scmp.lt.s32.totalorder %s41, 1
        %s684 = scalar_select %p683, %s41, 1
        %s685 = scalar_lea.vmem %s7, %s684
        %p686 = pneg %p251
        %p687 = pneg %p248
        %p688 = scmp.lt.s32.totalorder %s41, 1
        %s689 = scalar_select %p688, %s41, 1
        %s690 = smul.addr %s689, 8
        %s691 = smul.addr %s690, 4
        %s692 = scalar_lea.vmem %s8, %s691
        %p693 = pneg %p277
        %p694 = pneg %p274
        %p695 = scmp.lt.s32.totalorder %s41, 1
        %s696 = scalar_select %p695, %s41, 1
        %s697 = scalar_lea.vmem %s9, %s696
        %p698 = pneg %p303
        %p699 = pneg %p300
        %p700 = scmp.lt.s32.totalorder %s41, 1
        %s701 = scalar_select %p700, %s41, 1
        %s702 = scalar_lea.vmem %s10, %s701
        %p703 = pneg %p329
        %p704 = pneg %p326
        %p705 = scmp.lt.s32.totalorder %s41, 1
        %s706 = scalar_select %p705, %s41, 1
        %s707 = scalar_lea.vmem %s11, %s706
        %p708 = pneg %p355
        %p709 = pneg %p352
        %p710 = scmp.lt.s32.totalorder %s41, 1
        %s711 = scalar_select %p710, %s41, 1
        %s712 = scalar_lea.vmem %s12, %s711
        %p713 = pneg %p381
        %p714 = pneg %p378
        %p715 = scmp.lt.s32.totalorder %s41, 1
        %s716 = scalar_select %p715, %s41, 1
        %s717 = scalar_lea.vmem %s13, %s716
        %p718 = pneg %p407
        %p719 = pneg %p404
        %p720 = pneg %p428
        %p721 = pneg %p425
        %p722 = pneg %p449
        %p723 = pneg %p446
        %p724 = pneg %p475
        %p725 = pneg %p472
        %s726 = sand.u32 %s462, 1
        %s727 = scalar_lea.sflag [#allocation5], %s726
        %s728 = sand.u32 %s462, 1
        %s729 = smul.addr %s728, 8
        %s730 = scalar_lea.vmem [#allocation8], %s729
        %p731 = scmp.lt.s32.totalorder %s41, 1
        %s732 = scalar_select %p731, %s41, 1
        %s733 = smul.addr %s732, 4
        %s734 = smul.addr %s733, 4
        %s735 = scalar_lea.vmem %s2, %s734
        %p736 = scmp.lt.s32.totalorder %s41, 1
        %s737 = scalar_select %p736, %s41, 1
        %s738 = scalar_lea.vmem %s3, %s737
        %p739 = scmp.lt.s32.totalorder %s41, 1
        %s740 = scalar_select %p739, %s41, 1
        %s741 = smul.addr %s740, 4
        %s742 = smul.addr %s741, 4
        %s743 = scalar_lea.vmem %s4, %s742
        %p744 = scmp.lt.s32.totalorder %s41, 1
        %s745 = scalar_select %p744, %s41, 1
        %s746 = scalar_lea.vmem %s5, %s745
        %p747 = scmp.lt.s32.totalorder %s41, 1
        %s748 = scalar_select %p747, %s41, 1
        %s749 = smul.addr %s748, 4
        %s750 = smul.addr %s749, 4
        %s751 = scalar_lea.vmem %s6, %s750
        %p752 = scmp.lt.s32.totalorder %s41, 1
        %s753 = scalar_select %p752, %s41, 1
        %s754 = scalar_lea.vmem %s7, %s753
        %p755 = scmp.lt.s32.totalorder %s41, 1
        %s756 = scalar_select %p755, %s41, 1
        %s757 = smul.addr %s756, 8
        %s758 = smul.addr %s757, 4
        %s759 = scalar_lea.vmem %s8, %s758
        %p760 = scmp.lt.s32.totalorder %s41, 1
        %s761 = scalar_select %p760, %s41, 1
        %s762 = scalar_lea.vmem %s9, %s761
        %p763 = scmp.lt.s32.totalorder %s41, 1
        %s764 = scalar_select %p763, %s41, 1
        %s765 = scalar_lea.vmem %s10, %s764
        %p766 = scmp.lt.s32.totalorder %s41, 1
        %s767 = scalar_select %p766, %s41, 1
        %s768 = scalar_lea.vmem %s11, %s767
        %p769 = scmp.lt.s32.totalorder %s41, 1
        %s770 = scalar_select %p769, %s41, 1
        %s771 = scalar_lea.vmem %s12, %s770
        %p772 = scmp.lt.s32.totalorder %s41, 1
        %s773 = scalar_select %p772, %s41, 1
        %s774 = scalar_lea.vmem %s13, %s773
        %p776 = scmp.eq.s32.totalorder %s41, 0
        // Predicated region
        $region93: #{tpu_custom_call.1} parent=83 // pred_check
          %p777 = pneg %p776
        $region94: #{tpu_custom_call.1} parent=83 // pred_check_branch
          %779 = sbr.rel (%p777) target = $region96
        $region95: #{tpu_custom_call.1} parent=83 // pred_region
          %v780 = vld [vmem:[%s626] sm:$0xff]
          %vm781 = vcmask 261120
          %782 = vst.msk [vmem:[#allocation2] sm:$0xff] %vm781, %v780
        $region96: #{tpu_custom_call.1} parent=83 // pred_fallthru
          _
        %v783 = vld [vmem:[#allocation2] sm:$0xff]
        %v784 = vld [vmem:[%s765] sm:$0x1]
        %v785 = vld [vmem:[%s768] sm:$0x1]
        %vm786 = vcmask 261120
        %v787 = vsel %vm786, %v783, 0.0
        %788 = vadd.xlane.f32.xlu0 %v787
        %v789 = vpop.xlane.xlu0 %788
        %v790 = vrcp.pop 32.0
        %v791 = vmul.f32 %v789, %v790
        %v792 = vsub.f32 %v783, %v791
        %v793 = vmul.f32 %v792, %v792
        %v794 = vsel %vm786, %v793, 0.0
        %795 = vadd.xlane.f32.xlu0 %v794
        %v796 = vpop.xlane.xlu0 %795
        %v797 = vrcp.pop 31.0
        %v798 = vmul.f32 %v796, %v797
        %v800 = vlaneseq
        %v801 = vshrl.u32 %v800, 7
        %v802 = vsub.s32 0, %v801
        %v803 = vrot.slane %v784, %v802
        %v805 = vmul.f32 %v803, %v792
        %v806 = vrsqrt.pop %v798
        %v807 = vmul.f32 %v798, %v806
        %vm808 = vcmp.eq.f32.partialorder %v798, inf
        %v809 = vsel %vm808, %v798, %v807
        %vm810 = vcmp.eq.f32.partialorder %v798, 0.0
        %v811 = vand.u32 %v798, 2147483648
        %v812 = vsel %vm810, %v811, %v809
        %v813 = vadd.f32 %v812, 1e-06
        %v814 = vrcp.pop %v813
        %v815 = vmul.f32 %v805, %v814
        %v817 = vlaneseq
        %v818 = vshrl.u32 %v817, 7
        %v819 = vsub.s32 0, %v818
        %v820 = vrot.slane %v785, %v819
        %v822 = vadd.f32 %v815, %v820
        %v823 = vpack.c.bf16 %v822, %v822
        %v824 = vld [vmem:[%s735] sm:$0xf]
        %v825 = vld [vmem:[%s735 + $0x4] sm:$0xf]
        %v826 = vld [vmem:[%s735 + $0x8] sm:$0xf]
        %v827 = vld [vmem:[%s735 + $0xc] sm:$0xf]
        %v828 = vld [vmem:[%s738] sm:$0x1]
        %v830 = vlaneseq
        %v831 = vshrl.u32 %v830, 7
        %v832 = vsub.s32 0, %v831
        %v833 = vrot.slane %v828, %v832
        %v839 = vunpack.c.l.b16 %v824
        %v840 = vunpack.c.l.b16 %v825
        %v841 = vunpack.c.l.b16 %v826
        %v842 = vunpack.c.l.b16 %v827
        %v843 = vpack.c.b16 %v840, %v839
        %v844 = vpack.c.b16 %v842, %v841
        %v848 = vsel %vm786, %v823, 0
        %850 = vmatprep.subr.bf16.mxu0 0
        %851 = vmatpush1.bf16.msra.mxu0 0
        %852 = vmatprep.subr.bf16.mxu0 0
        %853 = vmatpush1.bf16.msra.mxu0 0
        %854 = vmatprep.subr.bf16.mxu0 0
        %855 = vmatpush1.bf16.msra.mxu0 0
        %856 = vmatprep.subr.bf16.mxu0 0
        %857 = vmatpush1.bf16.msra.mxu0 0
        %858 = vmatprep.subr.bf16.mxu0 0
        %859 = vmatpush1.bf16.msra.mxu0 0
        %860 = vmatprep.subr.bf16.mxu0 0
        %861 = vmatpush1.bf16.msra.mxu0 0
        %862 = vmatprep.subr.bf16.mxu0 0
        %863 = vmatpush1.bf16.msra.mxu0 %v844
        %864 = vmatprep.subr.bf16.mxu0 0
        %865 = vmatpush1.bf16.msra.mxu0 %v843
        %866 = vmatprep.subr.bf16.mxu0 0
        %867 = vmatpush2.bf16.msra.mxu0 0
        %868 = vmatprep.subr.bf16.mxu0 0
        %869 = vmatpush2.bf16.msra.mxu0 0
        %870 = vmatprep.subr.bf16.mxu0 0
        %871 = vmatpush2.bf16.msra.mxu0 0
        %872 = vmatprep.subr.bf16.mxu0 0
        %873 = vmatpush2.bf16.msra.mxu0 0
        %874 = vmatprep.subr.bf16.mxu0 0
        %875 = vmatpush2.bf16.msra.mxu0 0
        %876 = vmatprep.subr.bf16.mxu0 0
        %877 = vmatpush2.bf16.msra.mxu0 0
        %878 = vmatprep.subr.bf16.mxu0 0
        %879 = vmatpush2.bf16.msra.mxu0 0
        %880 = vmatprep.subr.bf16.mxu0 0
        %881 = vmatpush2.bf16.msra.mxu0 0
        %882 = vmatprep.mubr.bf16.mxu0 0
        %883 = vmatmul.mubr.bf16.gmra.mxu0 %v848
        %v884 = vpop.f32.mrf.mxu0
        %v885 = vadd.f32 %v833, %v884
        %v886 = vpop.f32.mrf.mxu0
        %v887 = vpop.f32.mrf.mxu0
        %v888 = vpop.f32.mrf.mxu0
        %889 = vdwg.mxu0
        %v890 = vpack.c.bf16 %v885, %v885
        %v891 = vld [vmem:[%s634] sm:$0x1]
        %v892 = vsub.f32 %v891, 1.0
        %v893 = vmul.f32 %v892, 1e+09
        %v895 = vlaneseq
        %v896 = vshrl.u32 %v895, 7
        %v897 = vsub.s32 0, %v896
        %v898 = vrot.slane %v893, %v897
        %901 = vrot.lane.b32.xlu0 %v890, 96
        %v902 = vpop.permute.xlu0 %901
        %vm903 = vcmask 64512
        %v905 = vsel %vm903, %v890, 0
        %v908 = vsel %vm903, %v902, 0
        %910 = vmatprep.subr.bf16.mxu0 0
        %911 = vmatpush1.bf16.xpose.msra.mxu0 0
        %912 = vmatprep.subr.bf16.mxu0 0
        %913 = vmatpush1.bf16.xpose.msra.mxu0 0
        %914 = vmatprep.subr.bf16.mxu0 0
        %915 = vmatpush1.bf16.xpose.msra.mxu0 0
        %916 = vmatprep.subr.bf16.mxu0 0
        %917 = vmatpush1.bf16.xpose.msra.mxu0 0
        %918 = vmatprep.subr.bf16.mxu0 0
        %919 = vmatpush1.bf16.xpose.msra.mxu0 0
        %920 = vmatprep.subr.bf16.mxu0 0
        %921 = vmatpush1.bf16.xpose.msra.mxu0 0
        %922 = vmatprep.subr.bf16.mxu0 0
        %923 = vmatpush1.bf16.xpose.msra.mxu0 0
        %924 = vmatprep.subr.bf16.mxu0 0
        %925 = vmatpush1.bf16.xpose.msra.mxu0 %v908
        %926 = vmatprep.subr.bf16.mxu0 0
        %927 = vmatpush2.bf16.xpose.msra.mxu0 0
        %928 = vmatprep.subr.bf16.mxu0 0
        %929 = vmatpush2.bf16.xpose.msra.mxu0 0
        %930 = vmatprep.subr.bf16.mxu0 0
        %931 = vmatpush2.bf16.xpose.msra.mxu0 0
        %932 = vmatprep.subr.bf16.mxu0 0
        %933 = vmatpush2.bf16.xpose.msra.mxu0 0
        %934 = vmatprep.subr.bf16.mxu0 0
        %935 = vmatpush2.bf16.xpose.msra.mxu0 0
        %936 = vmatprep.subr.bf16.mxu0 0
        %937 = vmatpush2.bf16.xpose.msra.mxu0 0
        %938 = vmatprep.subr.bf16.mxu0 0
        %939 = vmatpush2.bf16.xpose.msra.mxu0 0
        %940 = vmatprep.subr.bf16.mxu0 0
        %941 = vmatpush2.bf16.xpose.msra.mxu0 0
        %942 = vmatprep.mubr.bf16.mxu0 0
        %943 = vmatmul.mubr.bf16.gmra.mxu0 %v905
        %v944 = vpop.f32.mrf.mxu0
        %v945 = vadd.f32 %v898, %v944
        %v946 = vpop.f32.mrf.mxu0
        %v947 = vpop.f32.mrf.mxu0
        %v948 = vpop.f32.mrf.mxu0
        %949 = vdwg.mxu0
        %v950 = vsel %vm903, %v945, -inf
        %951 = vmax.xlane.f32.xlu0 %v950
        %v952 = vpop.xlane.xlu0 %951
        %v953 = vsub.f32 %v945, %v952
        %v954 = vmul.f32 %v953, 1.442695
        %v955 = vpow.pop %v954
        %v956 = vsel %vm903, %v955, 0.0
        %957 = vadd.xlane.f32.xlu0 %v956
        %v958 = vpop.xlane.xlu0 %957
        %v959 = vrcp.pop %v958
        %v960 = vmul.f32 %v955, %v959
        %v961 = vpack.c.bf16 %v960, %v960
        %962 = vrot.lane.b32.xlu0 %v890, 64
        %v963 = vpop.permute.xlu0 %962
        %v965 = vsel %vm903, %v961, 0
        %vm967 = vcmask 1043456
        %v969 = vsel %vm967, %v963, 0
        %971 = vmatprep.subr.bf16.mxu0 0
        %972 = vmatpush1.bf16.msra.mxu0 0
        %973 = vmatprep.subr.bf16.mxu0 0
        %974 = vmatpush1.bf16.msra.mxu0 0
        %975 = vmatprep.subr.bf16.mxu0 0
        %976 = vmatpush1.bf16.msra.mxu0 0
        %977 = vmatprep.subr.bf16.mxu0 0
        %978 = vmatpush1.bf16.msra.mxu0 0
        %979 = vmatprep.subr.bf16.mxu0 0
        %980 = vmatpush1.bf16.msra.mxu0 0
        %981 = vmatprep.subr.bf16.mxu0 0
        %982 = vmatpush1.bf16.msra.mxu0 0
        %983 = vmatprep.subr.bf16.mxu0 0
        %984 = vmatpush1.bf16.msra.mxu0 0
        %985 = vmatprep.subr.bf16.mxu0 0
        %986 = vmatpush1.bf16.msra.mxu0 %v969
        %987 = vmatprep.subr.bf16.mxu0 0
        %988 = vmatpush2.bf16.msra.mxu0 0
        %989 = vmatprep.subr.bf16.mxu0 0
        %990 = vmatpush2.bf16.msra.mxu0 0
        %991 = vmatprep.subr.bf16.mxu0 0
        %992 = vmatpush2.bf16.msra.mxu0 0
        %993 = vmatprep.subr.bf16.mxu0 0
        %994 = vmatpush2.bf16.msra.mxu0 0
        %995 = vmatprep.subr.bf16.mxu0 0
        %996 = vmatpush2.bf16.msra.mxu0 0
        %997 = vmatprep.subr.bf16.mxu0 0
        %998 = vmatpush2.bf16.msra.mxu0 0
        %999 = vmatprep.subr.bf16.mxu0 0
        %1000 = vmatpush2.bf16.msra.mxu0 0
        %1001 = vmatprep.subr.bf16.mxu0 0
        %1002 = vmatpush2.bf16.msra.mxu0 0
        %1003 = vmatprep.mubr.bf16.mxu0 0
        %1004 = vmatmul.mubr.bf16.gmra.mxu0 %v965
        %v1005 = vpop.f32.mrf.mxu0
        %v1006 = vadd.f32 0.0, %v1005
        %v1007 = vpop.f32.mrf.mxu0
        %v1008 = vpop.f32.mrf.mxu0
        %v1009 = vpop.f32.mrf.mxu0
        %1010 = vdwg.mxu0
        %v1011 = vld [vmem:[%s743] sm:$0xf]
        %v1012 = vpack.c.bf16 %v1006, %v1006
        %1013 = vrot.lane.b32.xlu0 %v890, 120
        %v1014 = vpop.permute.xlu0 %1013
        %1015 = vrot.lane.b32.xlu0 %v890, 88
        %v1016 = vpop.permute.xlu0 %1015
        %v1018 = vsel %vm903, %v1014, 0
        %v1021 = vsel %vm903, %v1016, 0
        %1023 = vmatprep.subr.bf16.mxu0 0
        %1024 = vmatpush1.bf16.xpose.msra.mxu0 0
        %1025 = vmatprep.subr.bf16.mxu0 0
        %1026 = vmatpush1.bf16.xpose.msra.mxu0 0
        %1027 = vmatprep.subr.bf16.mxu0 0
        %1028 = vmatpush1.bf16.xpose.msra.mxu0 0
        %1029 = vmatprep.subr.bf16.mxu0 0
        %1030 = vmatpush1.bf16.xpose.msra.mxu0 0
        %1031 = vmatprep.subr.bf16.mxu0 0
        %1032 = vmatpush1.bf16.xpose.msra.mxu0 0
        %1033 = vmatprep.subr.bf16.mxu0 0
        %1034 = vmatpush1.bf16.xpose.msra.mxu0 0
        %1035 = vmatprep.subr.bf16.mxu0 0
        %1036 = vmatpush1.bf16.xpose.msra.mxu0 0
        %1037 = vmatprep.subr.bf16.mxu0 0
        %1038 = vmatpush1.bf16.xpose.msra.mxu0 %v1021
        %1039 = vmatprep.subr.bf16.mxu0 0
        %1040 = vmatpush2.bf16.xpose.msra.mxu0 0
        %1041 = vmatprep.subr.bf16.mxu0 0
        %1042 = vmatpush2.bf16.xpose.msra.mxu0 0
        %1043 = vmatprep.subr.bf16.mxu0 0
        %1044 = vmatpush2.bf16.xpose.msra.mxu0 0
        %1045 = vmatprep.subr.bf16.mxu0 0
        %1046 = vmatpush2.bf16.xpose.msra.mxu0 0
        %1047 = vmatprep.subr.bf16.mxu0 0
        %1048 = vmatpush2.bf16.xpose.msra.mxu0 0
        %1049 = vmatprep.subr.bf16.mxu0 0
        %1050 = vmatpush2.bf16.xpose.msra.mxu0 0
        %1051 = vmatprep.subr.bf16.mxu0 0
        %1052 = vmatpush2.bf16.xpose.msra.mxu0 0
        %1053 = vmatprep.subr.bf16.mxu0 0
        %1054 = vmatpush2.bf16.xpose.msra.mxu0 0
        %1055 = vmatprep.mubr.bf16.mxu0 0
        %1056 = vmatmul.mubr.bf16.gmra.mxu0 %v1018
        %v1057 = vpop.f32.mrf.mxu0
        %v1058 = vadd.f32 %v898, %v1057
        %v1059 = vpop.f32.mrf.mxu0
        %v1060 = vpop.f32.mrf.mxu0
        %v1061 = vpop.f32.mrf.mxu0
        %1062 = vdwg.mxu0
        %v1063 = vsel %vm903, %v1058, -inf
        %1064 = vmax.xlane.f32.xlu0 %v1063
        %v1065 = vpop.xlane.xlu0 %1064
        %v1066 = vsub.f32 %v1058, %v1065
        %v1067 = vmul.f32 %v1066, 1.442695
        %v1068 = vpow.pop %v1067
        %v1069 = vsel %vm903, %v1068, 0.0
        %1070 = vadd.xlane.f32.xlu0 %v1069
        %v1071 = vpop.xlane.xlu0 %1070
        %v1072 = vrcp.pop %v1071
        %v1073 = vmul.f32 %v1068, %v1072
        %v1074 = vpack.c.bf16 %v1073, %v1073
        %1075 = vrot.lane.b32.xlu0 %v890, 56
        %v1076 = vpop.permute.xlu0 %1075
        %v1078 = vsel %vm903, %v1074, 0
        %v1081 = vsel %vm967, %v1076, 0
        %1083 = vmatprep.subr.bf16.mxu0 0
        %1084 = vmatpush1.bf16.msra.mxu0 0
        %1085 = vmatprep.subr.bf16.mxu0 0
        %1086 = vmatpush1.bf16.msra.mxu0 0
        %1087 = vmatprep.subr.bf16.mxu0 0
        %1088 = vmatpush1.bf16.msra.mxu0 0
        %1089 = vmatprep.subr.bf16.mxu0 0
        %1090 = vmatpush1.bf16.msra.mxu0 0
        %1091 = vmatprep.subr.bf16.mxu0 0
        %1092 = vmatpush1.bf16.msra.mxu0 0
        %1093 = vmatprep.subr.bf16.mxu0 0
        %1094 = vmatpush1.bf16.msra.mxu0 0
        %1095 = vmatprep.subr.bf16.mxu0 0
        %1096 = vmatpush1.bf16.msra.mxu0 0
        %1097 = vmatprep.subr.bf16.mxu0 0
        %1098 = vmatpush1.bf16.msra.mxu0 %v1081
        %1099 = vmatprep.subr.bf16.mxu0 0
        %1100 = vmatpush2.bf16.msra.mxu0 0
        %1101 = vmatprep.subr.bf16.mxu0 0
        %1102 = vmatpush2.bf16.msra.mxu0 0
        %1103 = vmatprep.subr.bf16.mxu0 0
        %1104 = vmatpush2.bf16.msra.mxu0 0
        %1105 = vmatprep.subr.bf16.mxu0 0
        %1106 = vmatpush2.bf16.msra.mxu0 0
        %1107 = vmatprep.subr.bf16.mxu0 0
        %1108 = vmatpush2.bf16.msra.mxu0 0
        %1109 = vmatprep.subr.bf16.mxu0 0
        %1110 = vmatpush2.bf16.msra.mxu0 0
        %1111 = vmatprep.subr.bf16.mxu0 0
        %1112 = vmatpush2.bf16.msra.mxu0 0
        %1113 = vmatprep.subr.bf16.mxu0 0
        %1114 = vmatpush2.bf16.msra.mxu0 0
        %1115 = vmatprep.mubr.bf16.mxu0 0
        %1116 = vmatmul.mubr.bf16.gmra.mxu0 %v1078
        %v1117 = vpop.f32.mrf.mxu0
        %v1118 = vadd.f32 0.0, %v1117
        %v1119 = vpop.f32.mrf.mxu0
        %v1120 = vpop.f32.mrf.mxu0
        %v1121 = vpop.f32.mrf.mxu0
        %1122 = vdwg.mxu0
        %v1123 = vld [vmem:[%s743 + $0x4] sm:$0xf]
        %v1124 = vpack.c.bf16 %v1118, %v1118
        %v1126 = vsel %vm903, %v1124, 0
        %v1129 = vsel %vm967, %v1123, 0
        %1131 = vmatprep.subr.bf16.mxu0 0
        %1132 = vmatpush1.bf16.msra.mxu0 0
        %1133 = vmatprep.subr.bf16.mxu0 0
        %1134 = vmatpush1.bf16.msra.mxu0 0
        %1135 = vmatprep.subr.bf16.mxu0 0
        %1136 = vmatpush1.bf16.msra.mxu0 0
        %1137 = vmatprep.subr.bf16.mxu0 0
        %1138 = vmatpush1.bf16.msra.mxu0 0
        %1139 = vmatprep.subr.bf16.mxu0 0
        %1140 = vmatpush1.bf16.msra.mxu0 0
        %1141 = vmatprep.subr.bf16.mxu0 0
        %1142 = vmatpush1.bf16.msra.mxu0 0
        %1143 = vmatprep.subr.bf16.mxu0 0
        %1144 = vmatpush1.bf16.msra.mxu0 0
        %1145 = vmatprep.subr.bf16.mxu0 0
        %1146 = vmatpush1.bf16.msra.mxu0 %v1129
        %1147 = vmatprep.subr.bf16.mxu0 0
        %1148 = vmatpush2.bf16.msra.mxu0 0
        %1149 = vmatprep.subr.bf16.mxu0 0
        %1150 = vmatpush2.bf16.msra.mxu0 0
        %1151 = vmatprep.subr.bf16.mxu0 0
        %1152 = vmatpush2.bf16.msra.mxu0 0
        %1153 = vmatprep.subr.bf16.mxu0 0
        %1154 = vmatpush2.bf16.msra.mxu0 0
        %1155 = vmatprep.subr.bf16.mxu0 0
        %1156 = vmatpush2.bf16.msra.mxu0 0
        %1157 = vmatprep.subr.bf16.mxu0 0
        %1158 = vmatpush2.bf16.msra.mxu0 0
        %1159 = vmatprep.subr.bf16.mxu0 0
        %1160 = vmatpush2.bf16.msra.mxu0 0
        %1161 = vmatprep.subr.bf16.mxu0 0
        %1162 = vmatpush2.bf16.msra.mxu0 0
        %1163 = vmatprep.mubr.bf16.mxu0 0
        %1164 = vmatmul.mubr.bf16.gmra.mxu0 %v1126
        %v1165 = vpop.f32.mrf.mxu0
        %v1166 = vadd.f32 0.0, %v1165
        %v1167 = vpop.f32.mrf.mxu0
        %v1168 = vpop.f32.mrf.mxu0
        %v1169 = vpop.f32.mrf.mxu0
        %1170 = vdwg.mxu0
        %v1172 = vsel %vm903, %v1012, 0
        %v1175 = vsel %vm967, %v1011, 0
        %1177 = vmatprep.subr.bf16.mxu0 0
        %1178 = vmatpush1.bf16.msra.mxu0 0
        %1179 = vmatprep.subr.bf16.mxu0 0
        %1180 = vmatpush1.bf16.msra.mxu0 0
        %1181 = vmatprep.subr.bf16.mxu0 0
        %1182 = vmatpush1.bf16.msra.mxu0 0
        %1183 = vmatprep.subr.bf16.mxu0 0
        %1184 = vmatpush1.bf16.msra.mxu0 0
        %1185 = vmatprep.subr.bf16.mxu0 0
        %1186 = vmatpush1.bf16.msra.mxu0 0
        %1187 = vmatprep.subr.bf16.mxu0 0
        %1188 = vmatpush1.bf16.msra.mxu0 0
        %1189 = vmatprep.subr.bf16.mxu0 0
        %1190 = vmatpush1.bf16.msra.mxu0 0
        %1191 = vmatprep.subr.bf16.mxu0 0
        %1192 = vmatpush1.bf16.msra.mxu0 %v1175
        %1193 = vmatprep.subr.bf16.mxu0 0
        %1194 = vmatpush2.bf16.msra.mxu0 0
        %1195 = vmatprep.subr.bf16.mxu0 0
        %1196 = vmatpush2.bf16.msra.mxu0 0
        %1197 = vmatprep.subr.bf16.mxu0 0
        %1198 = vmatpush2.bf16.msra.mxu0 0
        %1199 = vmatprep.subr.bf16.mxu0 0
        %1200 = vmatpush2.bf16.msra.mxu0 0
        %1201 = vmatprep.subr.bf16.mxu0 0
        %1202 = vmatpush2.bf16.msra.mxu0 0
        %1203 = vmatprep.subr.bf16.mxu0 0
        %1204 = vmatpush2.bf16.msra.mxu0 0
        %1205 = vmatprep.subr.bf16.mxu0 0
        %1206 = vmatpush2.bf16.msra.mxu0 0
        %1207 = vmatprep.subr.bf16.mxu0 0
        %1208 = vmatpush2.bf16.msra.mxu0 0
        %1209 = vmatprep.mubr.bf16.mxu0 0
        %1210 = vmatmul.mubr.bf16.gmra.mxu0 %v1172
        %v1211 = vpop.f32.mrf.mxu0
        %v1212 = vadd.f32 %v1166, %v1211
        %v1213 = vpop.f32.mrf.mxu0
        %v1214 = vpop.f32.mrf.mxu0
        %v1215 = vpop.f32.mrf.mxu0
        %1216 = vdwg.mxu0
        %1217 = vrot.lane.b32.xlu0 %v890, 112
        %v1218 = vpop.permute.xlu0 %1217
        %1219 = vrot.lane.b32.xlu0 %v890, 80
        %v1220 = vpop.permute.xlu0 %1219
        %v1222 = vsel %vm903, %v1218, 0
        %v1225 = vsel %vm903, %v1220, 0
        %1227 = vmatprep.subr.bf16.mxu0 0
        %1228 = vmatpush1.bf16.xpose.msra.mxu0 0
        %1229 = vmatprep.subr.bf16.mxu0 0
        %1230 = vmatpush1.bf16.xpose.msra.mxu0 0
        %1231 = vmatprep.subr.bf16.mxu0 0
        %1232 = vmatpush1.bf16.xpose.msra.mxu0 0
        %1233 = vmatprep.subr.bf16.mxu0 0
        %1234 = vmatpush1.bf16.xpose.msra.mxu0 0
        %1235 = vmatprep.subr.bf16.mxu0 0
        %1236 = vmatpush1.bf16.xpose.msra.mxu0 0
        %1237 = vmatprep.subr.bf16.mxu0 0
        %1238 = vmatpush1.bf16.xpose.msra.mxu0 0
        %1239 = vmatprep.subr.bf16.mxu0 0
        %1240 = vmatpush1.bf16.xpose.msra.mxu0 0
        %1241 = vmatprep.subr.bf16.mxu0 0
        %1242 = vmatpush1.bf16.xpose.msra.mxu0 %v1225
        %1243 = vmatprep.subr.bf16.mxu0 0
        %1244 = vmatpush2.bf16.xpose.msra.mxu0 0
        %1245 = vmatprep.subr.bf16.mxu0 0
        %1246 = vmatpush2.bf16.xpose.msra.mxu0 0
        %1247 = vmatprep.subr.bf16.mxu0 0
        %1248 = vmatpush2.bf16.xpose.msra.mxu0 0
        %1249 = vmatprep.subr.bf16.mxu0 0
        %1250 = vmatpush2.bf16.xpose.msra.mxu0 0
        %1251 = vmatprep.subr.bf16.mxu0 0
        %1252 = vmatpush2.bf16.xpose.msra.mxu0 0
        %1253 = vmatprep.subr.bf16.mxu0 0
        %1254 = vmatpush2.bf16.xpose.msra.mxu0 0
        %1255 = vmatprep.subr.bf16.mxu0 0
        %1256 = vmatpush2.bf16.xpose.msra.mxu0 0
        %1257 = vmatprep.subr.bf16.mxu0 0
        %1258 = vmatpush2.bf16.xpose.msra.mxu0 0
        %1259 = vmatprep.mubr.bf16.mxu0 0
        %1260 = vmatmul.mubr.bf16.gmra.mxu0 %v1222
        %v1261 = vpop.f32.mrf.mxu0
        %v1262 = vadd.f32 %v898, %v1261
        %v1263 = vpop.f32.mrf.mxu0
        %v1264 = vpop.f32.mrf.mxu0
        %v1265 = vpop.f32.mrf.mxu0
        %1266 = vdwg.mxu0
        %v1267 = vsel %vm903, %v1262, -inf
        %1268 = vmax.xlane.f32.xlu0 %v1267
        %v1269 = vpop.xlane.xlu0 %1268
        %v1270 = vsub.f32 %v1262, %v1269
        %v1271 = vmul.f32 %v1270, 1.442695
        %v1272 = vpow.pop %v1271
        %v1273 = vsel %vm903, %v1272, 0.0
        %1274 = vadd.xlane.f32.xlu0 %v1273
        %v1275 = vpop.xlane.xlu0 %1274
        %v1276 = vrcp.pop %v1275
        %v1277 = vmul.f32 %v1272, %v1276
        %v1278 = vpack.c.bf16 %v1277, %v1277
        %1279 = vrot.lane.b32.xlu0 %v890, 48
        %v1280 = vpop.permute.xlu0 %1279
        %v1282 = vsel %vm903, %v1278, 0
        %v1285 = vsel %vm967, %v1280, 0
        %1287 = vmatprep.subr.bf16.mxu0 0
        %1288 = vmatpush1.bf16.msra.mxu0 0
        %1289 = vmatprep.subr.bf16.mxu0 0
        %1290 = vmatpush1.bf16.msra.mxu0 0
        %1291 = vmatprep.subr.bf16.mxu0 0
        %1292 = vmatpush1.bf16.msra.mxu0 0
        %1293 = vmatprep.subr.bf16.mxu0 0
        %1294 = vmatpush1.bf16.msra.mxu0 0
        %1295 = vmatprep.subr.bf16.mxu0 0
        %1296 = vmatpush1.bf16.msra.mxu0 0
        %1297 = vmatprep.subr.bf16.mxu0 0
        %1298 = vmatpush1.bf16.msra.mxu0 0
        %1299 = vmatprep.subr.bf16.mxu0 0
        %1300 = vmatpush1.bf16.msra.mxu0 0
        %1301 = vmatprep.subr.bf16.mxu0 0
        %1302 = vmatpush1.bf16.msra.mxu0 %v1285
        %1303 = vmatprep.subr.bf16.mxu0 0
        %1304 = vmatpush2.bf16.msra.mxu0 0
        %1305 = vmatprep.subr.bf16.mxu0 0
        %1306 = vmatpush2.bf16.msra.mxu0 0
        %1307 = vmatprep.subr.bf16.mxu0 0
        %1308 = vmatpush2.bf16.msra.mxu0 0
        %1309 = vmatprep.subr.bf16.mxu0 0
        %1310 = vmatpush2.bf16.msra.mxu0 0
        %1311 = vmatprep.subr.bf16.mxu0 0
        %1312 = vmatpush2.bf16.msra.mxu0 0
        %1313 = vmatprep.subr.bf16.mxu0 0
        %1314 = vmatpush2.bf16.msra.mxu0 0
        %1315 = vmatprep.subr.bf16.mxu0 0
        %1316 = vmatpush2.bf16.msra.mxu0 0
        %1317 = vmatprep.subr.bf16.mxu0 0
        %1318 = vmatpush2.bf16.msra.mxu0 0
        %1319 = vmatprep.mubr.bf16.mxu0 0
        %1320 = vmatmul.mubr.bf16.gmra.mxu0 %v1282
        %v1321 = vpop.f32.mrf.mxu0
        %v1322 = vadd.f32 0.0, %v1321
        %v1323 = vpop.f32.mrf.mxu0
        %v1324 = vpop.f32.mrf.mxu0
        %v1325 = vpop.f32.mrf.mxu0
        %1326 = vdwg.mxu0
        %v1327 = vld [vmem:[%s743 + $0x8] sm:$0xf]
        %v1328 = vpack.c.bf16 %v1322, %v1322
        %v1330 = vsel %vm903, %v1328, 0
        %v1333 = vsel %vm967, %v1327, 0
        %1335 = vmatprep.subr.bf16.mxu0 0
        %1336 = vmatpush1.bf16.msra.mxu0 0
        %1337 = vmatprep.subr.bf16.mxu0 0
        %1338 = vmatpush1.bf16.msra.mxu0 0
        %1339 = vmatprep.subr.bf16.mxu0 0
        %1340 = vmatpush1.bf16.msra.mxu0 0
        %1341 = vmatprep.subr.bf16.mxu0 0
        %1342 = vmatpush1.bf16.msra.mxu0 0
        %1343 = vmatprep.subr.bf16.mxu0 0
        %1344 = vmatpush1.bf16.msra.mxu0 0
        %1345 = vmatprep.subr.bf16.mxu0 0
        %1346 = vmatpush1.bf16.msra.mxu0 0
        %1347 = vmatprep.subr.bf16.mxu0 0
        %1348 = vmatpush1.bf16.msra.mxu0 0
        %1349 = vmatprep.subr.bf16.mxu0 0
        %1350 = vmatpush1.bf16.msra.mxu0 %v1333
        %1351 = vmatprep.subr.bf16.mxu0 0
        %1352 = vmatpush2.bf16.msra.mxu0 0
        %1353 = vmatprep.subr.bf16.mxu0 0
        %1354 = vmatpush2.bf16.msra.mxu0 0
        %1355 = vmatprep.subr.bf16.mxu0 0
        %1356 = vmatpush2.bf16.msra.mxu0 0
        %1357 = vmatprep.subr.bf16.mxu0 0
        %1358 = vmatpush2.bf16.msra.mxu0 0
        %1359 = vmatprep.subr.bf16.mxu0 0
        %1360 = vmatpush2.bf16.msra.mxu0 0
        %1361 = vmatprep.subr.bf16.mxu0 0
        %1362 = vmatpush2.bf16.msra.mxu0 0
        %1363 = vmatprep.subr.bf16.mxu0 0
        %1364 = vmatpush2.bf16.msra.mxu0 0
        %1365 = vmatprep.subr.bf16.mxu0 0
        %1366 = vmatpush2.bf16.msra.mxu0 0
        %1367 = vmatprep.mubr.bf16.mxu0 0
        %1368 = vmatmul.mubr.bf16.gmra.mxu0 %v1330
        %v1369 = vpop.f32.mrf.mxu0
        %v1370 = vadd.f32 0.0, %v1369
        %v1371 = vpop.f32.mrf.mxu0
        %v1372 = vpop.f32.mrf.mxu0
        %v1373 = vpop.f32.mrf.mxu0
        %1374 = vdwg.mxu0
        %v1375 = vadd.f32 %v1212, %v1370
        %1376 = vrot.lane.b32.xlu0 %v890, 104
        %v1377 = vpop.permute.xlu0 %1376
        %1378 = vrot.lane.b32.xlu0 %v890, 72
        %v1379 = vpop.permute.xlu0 %1378
        %v1381 = vsel %vm903, %v1377, 0
        %v1384 = vsel %vm903, %v1379, 0
        %1386 = vmatprep.subr.bf16.mxu0 0
        %1387 = vmatpush1.bf16.xpose.msra.mxu0 0
        %1388 = vmatprep.subr.bf16.mxu0 0
        %1389 = vmatpush1.bf16.xpose.msra.mxu0 0
        %1390 = vmatprep.subr.bf16.mxu0 0
        %1391 = vmatpush1.bf16.xpose.msra.mxu0 0
        %1392 = vmatprep.subr.bf16.mxu0 0
        %1393 = vmatpush1.bf16.xpose.msra.mxu0 0
        %1394 = vmatprep.subr.bf16.mxu0 0
        %1395 = vmatpush1.bf16.xpose.msra.mxu0 0
        %1396 = vmatprep.subr.bf16.mxu0 0
        %1397 = vmatpush1.bf16.xpose.msra.mxu0 0
        %1398 = vmatprep.subr.bf16.mxu0 0
        %1399 = vmatpush1.bf16.xpose.msra.mxu0 0
        %1400 = vmatprep.subr.bf16.mxu0 0
        %1401 = vmatpush1.bf16.xpose.msra.mxu0 %v1384
        %1402 = vmatprep.subr.bf16.mxu0 0
        %1403 = vmatpush2.bf16.xpose.msra.mxu0 0
        %1404 = vmatprep.subr.bf16.mxu0 0
        %1405 = vmatpush2.bf16.xpose.msra.mxu0 0
        %1406 = vmatprep.subr.bf16.mxu0 0
        %1407 = vmatpush2.bf16.xpose.msra.mxu0 0
        %1408 = vmatprep.subr.bf16.mxu0 0
        %1409 = vmatpush2.bf16.xpose.msra.mxu0 0
        %1410 = vmatprep.subr.bf16.mxu0 0
        %1411 = vmatpush2.bf16.xpose.msra.mxu0 0
        %1412 = vmatprep.subr.bf16.mxu0 0
        %1413 = vmatpush2.bf16.xpose.msra.mxu0 0
        %1414 = vmatprep.subr.bf16.mxu0 0
        %1415 = vmatpush2.bf16.xpose.msra.mxu0 0
        %1416 = vmatprep.subr.bf16.mxu0 0
        %1417 = vmatpush2.bf16.xpose.msra.mxu0 0
        %1418 = vmatprep.mubr.bf16.mxu0 0
        %1419 = vmatmul.mubr.bf16.gmra.mxu0 %v1381
        %v1420 = vpop.f32.mrf.mxu0
        %v1421 = vadd.f32 %v898, %v1420
        %v1422 = vpop.f32.mrf.mxu0
        %v1423 = vpop.f32.mrf.mxu0
        %v1424 = vpop.f32.mrf.mxu0
        %1425 = vdwg.mxu0
        %v1426 = vsel %vm903, %v1421, -inf
        %1427 = vmax.xlane.f32.xlu0 %v1426
        %v1428 = vpop.xlane.xlu0 %1427
        %v1429 = vsub.f32 %v1421, %v1428
        %v1430 = vmul.f32 %v1429, 1.442695
        %v1431 = vpow.pop %v1430
        %v1432 = vsel %vm903, %v1431, 0.0
        %1433 = vadd.xlane.f32.xlu0 %v1432
        %v1434 = vpop.xlane.xlu0 %1433
        %v1435 = vrcp.pop %v1434
        %v1436 = vmul.f32 %v1431, %v1435
        %v1437 = vpack.c.bf16 %v1436, %v1436
        %1438 = vrot.lane.b32.xlu0 %v890, 40
        %v1439 = vpop.permute.xlu0 %1438
        %v1441 = vsel %vm903, %v1437, 0
        %v1444 = vsel %vm967, %v1439, 0
        %1446 = vmatprep.subr.bf16.mxu0 0
        %1447 = vmatpush1.bf16.msra.mxu0 0
        %1448 = vmatprep.subr.bf16.mxu0 0
        %1449 = vmatpush1.bf16.msra.mxu0 0
        %1450 = vmatprep.subr.bf16.mxu0 0
        %1451 = vmatpush1.bf16.msra.mxu0 0
        %1452 = vmatprep.subr.bf16.mxu0 0
        %1453 = vmatpush1.bf16.msra.mxu0 0
        %1454 = vmatprep.subr.bf16.mxu0 0
        %1455 = vmatpush1.bf16.msra.mxu0 0
        %1456 = vmatprep.subr.bf16.mxu0 0
        %1457 = vmatpush1.bf16.msra.mxu0 0
        %1458 = vmatprep.subr.bf16.mxu0 0
        %1459 = vmatpush1.bf16.msra.mxu0 0
        %1460 = vmatprep.subr.bf16.mxu0 0
        %1461 = vmatpush1.bf16.msra.mxu0 %v1444
        %1462 = vmatprep.subr.bf16.mxu0 0
        %1463 = vmatpush2.bf16.msra.mxu0 0
        %1464 = vmatprep.subr.bf16.mxu0 0
        %1465 = vmatpush2.bf16.msra.mxu0 0
        %1466 = vmatprep.subr.bf16.mxu0 0
        %1467 = vmatpush2.bf16.msra.mxu0 0
        %1468 = vmatprep.subr.bf16.mxu0 0
        %1469 = vmatpush2.bf16.msra.mxu0 0
        %1470 = vmatprep.subr.bf16.mxu0 0
        %1471 = vmatpush2.bf16.msra.mxu0 0
        %1472 = vmatprep.subr.bf16.mxu0 0
        %1473 = vmatpush2.bf16.msra.mxu0 0
        %1474 = vmatprep.subr.bf16.mxu0 0
        %1475 = vmatpush2.bf16.msra.mxu0 0
        %1476 = vmatprep.subr.bf16.mxu0 0
        %1477 = vmatpush2.bf16.msra.mxu0 0
        %1478 = vmatprep.mubr.bf16.mxu0 0
        %1479 = vmatmul.mubr.bf16.gmra.mxu0 %v1441
        %v1480 = vpop.f32.mrf.mxu0
        %v1481 = vadd.f32 0.0, %v1480
        %v1482 = vpop.f32.mrf.mxu0
        %v1483 = vpop.f32.mrf.mxu0
        %v1484 = vpop.f32.mrf.mxu0
        %1485 = vdwg.mxu0
        %v1486 = vld [vmem:[%s743 + $0xc] sm:$0xf]
        %v1487 = vpack.c.bf16 %v1481, %v1481
        %v1489 = vsel %vm903, %v1487, 0
        %v1492 = vsel %vm967, %v1486, 0
        %1494 = vmatprep.subr.bf16.mxu0 0
        %1495 = vmatpush1.bf16.msra.mxu0 0
        %1496 = vmatprep.subr.bf16.mxu0 0
        %1497 = vmatpush1.bf16.msra.mxu0 0
        %1498 = vmatprep.subr.bf16.mxu0 0
        %1499 = vmatpush1.bf16.msra.mxu0 0
        %1500 = vmatprep.subr.bf16.mxu0 0
        %1501 = vmatpush1.bf16.msra.mxu0 0
        %1502 = vmatprep.subr.bf16.mxu0 0
        %1503 = vmatpush1.bf16.msra.mxu0 0
        %1504 = vmatprep.subr.bf16.mxu0 0
        %1505 = vmatpush1.bf16.msra.mxu0 0
        %1506 = vmatprep.subr.bf16.mxu0 0
        %1507 = vmatpush1.bf16.msra.mxu0 0
        %1508 = vmatprep.subr.bf16.mxu0 0
        %1509 = vmatpush1.bf16.msra.mxu0 %v1492
        %1510 = vmatprep.subr.bf16.mxu0 0
        %1511 = vmatpush2.bf16.msra.mxu0 0
        %1512 = vmatprep.subr.bf16.mxu0 0
        %1513 = vmatpush2.bf16.msra.mxu0 0
        %1514 = vmatprep.subr.bf16.mxu0 0
        %1515 = vmatpush2.bf16.msra.mxu0 0
        %1516 = vmatprep.subr.bf16.mxu0 0
        %1517 = vmatpush2.bf16.msra.mxu0 0
        %1518 = vmatprep.subr.bf16.mxu0 0
        %1519 = vmatpush2.bf16.msra.mxu0 0
        %1520 = vmatprep.subr.bf16.mxu0 0
        %1521 = vmatpush2.bf16.msra.mxu0 0
        %1522 = vmatprep.subr.bf16.mxu0 0
        %1523 = vmatpush2.bf16.msra.mxu0 0
        %1524 = vmatprep.subr.bf16.mxu0 0
        %1525 = vmatpush2.bf16.msra.mxu0 0
        %1526 = vmatprep.mubr.bf16.mxu0 0
        %1527 = vmatmul.mubr.bf16.gmra.mxu0 %v1489
        %v1528 = vpop.f32.mrf.mxu0
        %v1529 = vadd.f32 0.0, %v1528
        %v1530 = vpop.f32.mrf.mxu0
        %v1531 = vpop.f32.mrf.mxu0
        %v1532 = vpop.f32.mrf.mxu0
        %1533 = vdwg.mxu0
        %v1534 = vadd.f32 %v1375, %v1529
        %v1535 = vadd.f32 %v783, %v1534
        %v1536 = vld [vmem:[%s746] sm:$0x1]
        %v1538 = vlaneseq
        %v1539 = vshrl.u32 %v1538, 7
        %v1540 = vsub.s32 0, %v1539
        %v1541 = vrot.slane %v1536, %v1540
        %v1543 = vadd.f32 %v1535, %v1541
        %v1544 = vld [vmem:[%s771] sm:$0x1]
        %v1545 = vld [vmem:[%s774] sm:$0x1]
        %v1546 = vsel %vm786, %v1543, 0.0
        %1547 = vadd.xlane.f32.xlu0 %v1546
        %v1548 = vpop.xlane.xlu0 %1547
        %v1549 = vmul.f32 %v1548, %v790
        %v1550 = vsub.f32 %v1543, %v1549
        %v1551 = vmul.f32 %v1550, %v1550
        %v1552 = vsel %vm786, %v1551, 0.0
        %1553 = vadd.xlane.f32.xlu0 %v1552
        %v1554 = vpop.xlane.xlu0 %1553
        %v1555 = vmul.f32 %v1554, %v797
        %v1557 = vlaneseq
        %v1558 = vshrl.u32 %v1557, 7
        %v1559 = vsub.s32 0, %v1558
        %v1560 = vrot.slane %v1544, %v1559
        %v1562 = vmul.f32 %v1560, %v1550
        %v1563 = vrsqrt.pop %v1555
        %v1564 = vmul.f32 %v1555, %v1563
        %vm1565 = vcmp.eq.f32.partialorder %v1555, inf
        %v1566 = vsel %vm1565, %v1555, %v1564
        %vm1567 = vcmp.eq.f32.partialorder %v1555, 0.0
        %v1568 = vand.u32 %v1555, 2147483648
        %v1569 = vsel %vm1567, %v1568, %v1566
        %v1570 = vadd.f32 %v1569, 1e-06
        %v1571 = vrcp.pop %v1570
        %v1572 = vmul.f32 %v1562, %v1571
        %v1574 = vlaneseq
        %v1575 = vshrl.u32 %v1574, 7
        %v1576 = vsub.s32 0, %v1575
        %v1577 = vrot.slane %v1545, %v1576
        %v1579 = vadd.f32 %v1572, %v1577
        %v1580 = vpack.c.bf16 %v1579, %v1579
        %v1581 = vld [vmem:[%s751] sm:$0xf]
        %v1582 = vld [vmem:[%s751 + $0x4] sm:$0xf]
        %v1583 = vld [vmem:[%s751 + $0x8] sm:$0xf]
        %v1584 = vld [vmem:[%s751 + $0xc] sm:$0xf]
        %v1585 = vld [vmem:[%s754] sm:$0x1]
        %v1587 = vlaneseq
        %v1588 = vshrl.u32 %v1587, 7
        %v1589 = vsub.s32 0, %v1588
        %v1590 = vrot.slane %v1585, %v1589
        %v1596 = vunpack.c.l.b16 %v1581
        %v1597 = vunpack.c.l.b16 %v1582
        %v1598 = vunpack.c.l.b16 %v1583
        %v1599 = vunpack.c.l.b16 %v1584
        %v1600 = vpack.c.b16 %v1597, %v1596
        %v1601 = vpack.c.b16 %v1599, %v1598
        %v1605 = vsel %vm786, %v1580, 0
        %1607 = vmatprep.subr.bf16.mxu0 0
        %1608 = vmatpush1.bf16.msra.mxu0 0
        %1609 = vmatprep.subr.bf16.mxu0 0
        %1610 = vmatpush1.bf16.msra.mxu0 0
        %1611 = vmatprep.subr.bf16.mxu0 0
        %1612 = vmatpush1.bf16.msra.mxu0 0
        %1613 = vmatprep.subr.bf16.mxu0 0
        %1614 = vmatpush1.bf16.msra.mxu0 0
        %1615 = vmatprep.subr.bf16.mxu0 0
        %1616 = vmatpush1.bf16.msra.mxu0 0
        %1617 = vmatprep.subr.bf16.mxu0 0
        %1618 = vmatpush1.bf16.msra.mxu0 0
        %1619 = vmatprep.subr.bf16.mxu0 0
        %1620 = vmatpush1.bf16.msra.mxu0 %v1601
        %1621 = vmatprep.subr.bf16.mxu0 0
        %1622 = vmatpush1.bf16.msra.mxu0 %v1600
        %1623 = vmatprep.subr.bf16.mxu0 0
        %1624 = vmatpush2.bf16.msra.mxu0 0
        %1625 = vmatprep.subr.bf16.mxu0 0
        %1626 = vmatpush2.bf16.msra.mxu0 0
        %1627 = vmatprep.subr.bf16.mxu0 0
        %1628 = vmatpush2.bf16.msra.mxu0 0
        %1629 = vmatprep.subr.bf16.mxu0 0
        %1630 = vmatpush2.bf16.msra.mxu0 0
        %1631 = vmatprep.subr.bf16.mxu0 0
        %1632 = vmatpush2.bf16.msra.mxu0 0
        %1633 = vmatprep.subr.bf16.mxu0 0
        %1634 = vmatpush2.bf16.msra.mxu0 0
        %1635 = vmatprep.subr.bf16.mxu0 0
        %1636 = vmatpush2.bf16.msra.mxu0 0
        %1637 = vmatprep.subr.bf16.mxu0 0
        %1638 = vmatpush2.bf16.msra.mxu0 0
        %1639 = vmatprep.mubr.bf16.mxu0 0
        %1640 = vmatmul.mubr.bf16.gmra.mxu0 %v1605
        %v1641 = vpop.f32.mrf.mxu0
        %v1642 = vadd.f32 %v1590, %v1641
        %v1643 = vpop.f32.mrf.mxu0
        %v1644 = vpop.f32.mrf.mxu0
        %v1645 = vpop.f32.mrf.mxu0
        %1646 = vdwg.mxu0
        %v1647 = vmax.f32 %v1642, 0.0
        %v1648 = vpack.c.bf16 %v1647, %v1647
        %v1649 = vld [vmem:[%s759] sm:$0xf]
        %v1650 = vld [vmem:[%s759 + $0x4] sm:$0xf]
        %v1651 = vld [vmem:[%s759 + $0x8] sm:$0xf]
        %v1652 = vld [vmem:[%s759 + $0xc] sm:$0xf]
        %v1653 = vld [vmem:[%s759 + $0x10] sm:$0xf]
        %v1654 = vld [vmem:[%s759 + $0x14] sm:$0xf]
        %v1655 = vld [vmem:[%s759 + $0x18] sm:$0xf]
        %v1656 = vld [vmem:[%s759 + $0x1c] sm:$0xf]
        %v1657 = vld [vmem:[%s762] sm:$0x1]
        %v1659 = vlaneseq
        %v1660 = vshrl.u32 %v1659, 7
        %v1661 = vsub.s32 0, %v1660
        %v1662 = vrot.slane %v1657, %v1661
        %v1672 = vunpack.c.l.b16 %v1649
        %v1673 = vunpack.c.l.b16 %v1650
        %v1674 = vunpack.c.l.b16 %v1651
        %v1675 = vunpack.c.l.b16 %v1652
        %v1676 = vunpack.c.l.b16 %v1653
        %v1677 = vunpack.c.l.b16 %v1654
        %v1678 = vunpack.c.l.b16 %v1655
        %v1679 = vunpack.c.l.b16 %v1656
        %v1680 = vpack.c.b16 %v1673, %v1672
        %v1681 = vpack.c.b16 %v1675, %v1674
        %v1682 = vpack.c.b16 %v1677, %v1676
        %v1683 = vpack.c.b16 %v1679, %v1678
        %vm1688 = vcmask 523264
        %v1690 = vsel %vm1688, %v1648, 0
        %1692 = vmatprep.subr.bf16.mxu0 0
        %1693 = vmatpush1.bf16.msra.mxu0 0
        %1694 = vmatprep.subr.bf16.mxu0 0
        %1695 = vmatpush1.bf16.msra.mxu0 0
        %1696 = vmatprep.subr.bf16.mxu0 0
        %1697 = vmatpush1.bf16.msra.mxu0 0
        %1698 = vmatprep.subr.bf16.mxu0 0
        %1699 = vmatpush1.bf16.msra.mxu0 0
        %1700 = vmatprep.subr.bf16.mxu0 0
        %1701 = vmatpush1.bf16.msra.mxu0 %v1683
        %1702 = vmatprep.subr.bf16.mxu0 0
        %1703 = vmatpush1.bf16.msra.mxu0 %v1682
        %1704 = vmatprep.subr.bf16.mxu0 0
        %1705 = vmatpush1.bf16.msra.mxu0 %v1681
        %1706 = vmatprep.subr.bf16.mxu0 0
        %1707 = vmatpush1.bf16.msra.mxu0 %v1680
        %1708 = vmatprep.subr.bf16.mxu0 0
        %1709 = vmatpush2.bf16.msra.mxu0 0
        %1710 = vmatprep.subr.bf16.mxu0 0
        %1711 = vmatpush2.bf16.msra.mxu0 0
        %1712 = vmatprep.subr.bf16.mxu0 0
        %1713 = vmatpush2.bf16.msra.mxu0 0
        %1714 = vmatprep.subr.bf16.mxu0 0
        %1715 = vmatpush2.bf16.msra.mxu0 0
        %1716 = vmatprep.subr.bf16.mxu0 0
        %1717 = vmatpush2.bf16.msra.mxu0 0
        %1718 = vmatprep.subr.bf16.mxu0 0
        %1719 = vmatpush2.bf16.msra.mxu0 0
        %1720 = vmatprep.subr.bf16.mxu0 0
        %1721 = vmatpush2.bf16.msra.mxu0 0
        %1722 = vmatprep.subr.bf16.mxu0 0
        %1723 = vmatpush2.bf16.msra.mxu0 0
        %1724 = vmatprep.mubr.bf16.mxu0 0
        %1725 = vmatmul.mubr.bf16.gmra.mxu0 %v1690
        %v1726 = vpop.f32.mrf.mxu0
        %v1727 = vadd.f32 %v1662, %v1726
        %v1728 = vpop.f32.mrf.mxu0
        %v1729 = vpop.f32.mrf.mxu0
        %v1730 = vpop.f32.mrf.mxu0
        %1731 = vdwg.mxu0
        %v1732 = vadd.f32 %v1543, %v1727
        %1733 = vst.msk [vmem:[#allocation2] sm:$0xff] %vm786, %v1732
        %p1734 = scmp.eq.s32.totalorder %s41, 1
        // Predicated region
        $region97: #{tpu_custom_call.1} parent=83 // pred_check
          %p1735 = pneg %p1734
        $region98: #{tpu_custom_call.1} parent=83 // pred_check_branch
          %1737 = sbr.rel (%p1735) target = $region100
        $region99: #{tpu_custom_call.1} parent=83 // pred_region
          %v1738 = vld [vmem:[%s14] sm:$0x1]
          %v1739 = vld [vmem:[%s15] sm:$0x1]
          %v1740 = vsel %vm786, %v1732, 0.0
          %1741 = vadd.xlane.f32.xlu0 %v1740
          %v1742 = vpop.xlane.xlu0 %1741
          %v1743 = vmul.f32 %v1742, %v790
          %v1744 = vsub.f32 %v1732, %v1743
          %v1745 = vmul.f32 %v1744, %v1744
          %v1746 = vsel %vm786, %v1745, 0.0
          %1747 = vadd.xlane.f32.xlu0 %v1746
          %v1748 = vpop.xlane.xlu0 %1747
          %v1749 = vmul.f32 %v1748, %v797
          %v1751 = vlaneseq
          %v1752 = vshrl.u32 %v1751, 7
          %v1753 = vsub.s32 0, %v1752
          %v1754 = vrot.slane %v1738, %v1753
          %v1756 = vmul.f32 %v1754, %v1744
          %v1757 = vrsqrt.pop %v1749
          %v1758 = vmul.f32 %v1749, %v1757
          %vm1759 = vcmp.eq.f32.partialorder %v1749, inf
          %v1760 = vsel %vm1759, %v1749, %v1758
          %vm1761 = vcmp.eq.f32.partialorder %v1749, 0.0
          %v1762 = vand.u32 %v1749, 2147483648
          %v1763 = vsel %vm1761, %v1762, %v1760
          %v1764 = vadd.f32 %v1763, 1e-06
          %v1765 = vrcp.pop %v1764
          %v1766 = vmul.f32 %v1756, %v1765
          %v1768 = vlaneseq
          %v1769 = vshrl.u32 %v1768, 7
          %v1770 = vsub.s32 0, %v1769
          %v1771 = vrot.slane %v1739, %v1770
          %v1773 = vadd.f32 %v1766, %v1771
          %1774 = vst.msk [vmem:[%s730] sm:$0xff] %vm786, %v1773
        $region100: #{tpu_custom_call.1} parent=83 // pred_fallthru
          _
        %s1775 = sand.u32 %s462, 1
        %s1776 = scalar_lea.sflag [#allocation5], %s1775
        %s1777 = sand.u32 %s462, 1
        %s1778 = smul.addr %s1777, 8
        %s1779 = scalar_lea.vmem [#allocation8], %s1778
        // Predicated region
        $region101: #{tpu_custom_call.1} parent=83 // pred_check
          %p1780 = pneg %p472
        $region102: #{tpu_custom_call.1} parent=83 // pred_check_branch
          %1782 = sbr.rel (%p1780) target = $region104
        $region103: #{tpu_custom_call.1} parent=83 // pred_region
          %s1784 = ssub.s32 128, 128
          %1785 = vsyncadd %s1776, %s1784
          %s1786 = smul.addr %s40, 128
          %s1787 = scalar_lea.hbm %s16, %s1786
          %s1789 = sshll.u32 %s1779, 4
          %s1790 = int_to_ptr.vmem [resolvable:$true] %s1789
          %1792 = dma.vmem_to_hbm [thread:$0]  %s1790, 128, %s1787, %s1776
        $region104: #{tpu_custom_call.1} parent=83 // pred_fallthru
          _
      $region84: #{tpu_custom_call.1} parent=5 // pred_fallthru
        _
      %p1793 = scmp.le.s32.totalorder 2, %s31
      // Predicated region
      $region105: #{tpu_custom_call.1} parent=5 // pred_check
        %p1794 = pneg %p1793
      $region106: #{tpu_custom_call.1} parent=5 // pred_check_branch
        %1796 = sbr.rel (%p1794) target = $region108
      $region107: #{tpu_custom_call.1} parent=5 // pred_region
        %s1797 = ssub.s32 %s31, 2
        // Predicated region
        $region109: #{tpu_custom_call.1} parent=107 // pred_check
          %p1798 = pneg %p478
        $region110: #{tpu_custom_call.1} parent=107 // pred_check_branch
          %1800 = sbr.rel (%p1798) target = $region112
        $region111: #{tpu_custom_call.1} parent=107 // pred_region
          %s1801 = sand.u32 %s463, 1
          %s1802 = scalar_lea.sflag [#allocation5], %s1801
          %s1803 = sand.u32 %s463, 1
          %s1804 = smul.addr %s1803, 8
          %s1805 = scalar_lea.vmem [#allocation8], %s1804
          %1806 = dma.done %s1802, 128
        $region112: #{tpu_custom_call.1} parent=107 // pred_fallthru
          _
      $region108: #{tpu_custom_call.1} parent=5 // pred_fallthru
        _
    $region6: #{tpu_custom_call.1} parent=1 // loop_footer
      %s35 = sadd.s32 1, %s31
    $region7: #{tpu_custom_call.1} parent=1 // loop_footer_branch
      %30 = sbr.rel target = $region3
    $region8: #{tpu_custom_call.1} parent=1 // loop_exit
      _
    %1807 = vsyncpa [#allocation4], 1
    %s1808 = scalar_lea.sflag [#allocation4], 1
    %1809 = vsyncpa %s1808, 1
    %1810 = vsyncpa [#allocation7], 1
    %s1811 = scalar_lea.sflag [#allocation7], 1
    %1812 = vsyncpa %s1811, 1
    %1813 = vsyncpa [#allocation5], 1
    %s1814 = scalar_lea.sflag [#allocation5], 1
    %1815 = vsyncpa %s1814, 1

</llo_original>
